<compile_context>
chip_gen: v7x
topology: tpu7x:2x2x1
jax: 0.10.0
libtpu: 0.0.40
codegen_flags: <defaults>
</compile_context>

<pallas_src>
import functools
import math

import jax
import jax.numpy as jnp
from jax.experimental import pallas as pl
from jax.experimental.pallas import tpu as pltpu


# ----------------------------------------------------------------------------
# helpers
# ----------------------------------------------------------------------------
def _round_up(x, m):
    return -(-x // m) * m


def _gelu_tanh(x):
    # torch.nn.GELU(approximate='tanh')
    return 0.5 * x * (1.0 + jnp.tanh(0.7978845608028654 * (x + 0.044715 * x * x * x)))


def _full_spec(shape):
    zeros = (0,) * len(shape)
    return pl.BlockSpec(tuple(shape), lambda *_: zeros)


def _pad_to(x, shape):
    return jnp.pad(x, [(0, s - d) for d, s in zip(x.shape, shape)])


def _pick_time_tile(T, cap=512):
    """Time padding / block size: as few, as large blocks as possible (<=512 rows,
    multiple of 8).  Batch-axis parallelism (not a forced time split) feeds the
    second v7x TensorCore."""
    T_pad = _round_up(T, 8)
    n_blocks = -(-T_pad // cap)
    TT = _round_up(-(-T_pad // n_blocks), 8)
    return n_blocks * TT, TT


def _vmem_limit(est_bytes):
    """Scoped-VMEM request sized from the actual blocks (+headroom), clamped so it is
    valid on v5e (16 MiB default) through v7x (64 MiB physical)."""
    return int(min(max(est_bytes + (8 << 20), 16 << 20), 60 << 20))


# ----------------------------------------------------------------------------
# Pallas kernels
# ----------------------------------------------------------------------------
def _fused_branches_kernel(cos_ref, lat_ref, noi_ref, enc_ref, f0_ref, st_ref,
                           pw_ref, pb_ref, ew1_ref, eb1_ref, ew2_ref, eb2_ref,
                           fw1_ref, fb1_ref, fw2_ref, fb2_ref,
                           x_ref):
    """noising prologue + prenet + encoding_ffn + f0_ffn + step broadcast + sum."""
    t = cos_ref[0]                                    # [1, 1]
    noised = t * lat_ref[0] + (1.0 - t) * noi_ref[0]  # fused mix (prologue) [TT, CP]
    # prenet (pointwise conv + GELU)
    x = _gelu_tanh(jnp.dot(noised.astype(jnp.bfloat16), pw_ref[...],
                           preferred_element_type=jnp.float32) + pb_ref[...])
    # encoding ffn (Linear -> GELU -> Linear), hidden stays in VMEM
    h = _gelu_tanh(jnp.dot(enc_ref[0].astype(jnp.bfloat16), ew1_ref[...],
                           preferred_element_type=jnp.float32) + eb1_ref[...])
    e = jnp.dot(h.astype(jnp.bfloat16), ew2_ref[...],
                preferred_element_type=jnp.float32) + eb2_ref[...]
    # f0 ffn (first Linear has K=1: pure VPU broadcast outer product)
    hf = _gelu_tanh(f0_ref[0] * fw1_ref[...] + fb1_ref[...])
    f = jnp.dot(hf.astype(jnp.bfloat16), fw2_ref[...],
                preferred_element_type=jnp.float32) + fb2_ref[...]
    # sum; st_ref[0] is [1, DP] and broadcasts over time rows
    x_ref[0] = x + e + f + st_ref[0]


def _token_predictor_kernel(x_ref, wih_ref, whh_ref, b_ref, pw_ref, pb_ref,
                            o_ref, pg_ref, hall_ref, h_ref, c_ref, *, TT, Hp):
    """LSTM over one (batch, time-block) tile + batched projection + log_softmax.

    x_ref:  [1, TT, DP]            (batch-major model activation, lane-dense)
    wih:    [DP, 4*Hp] bf16  (gate order i, f, g, o concatenated along lanes)
    whh:    [Hp, 4*Hp] bf16
    b:      [1, 4*Hp] f32    (fused b_ih + b_hh)
    pw/pb:  [Hp, KP] bf16 / [1, KP] f32 (-1e30 bias on padded logit lanes)
    o_ref:  [1, TT, KP] log-softmax outputs
    scratch: pg [TT, 4Hp], hall [TT, Hp], h/c carry [1, Hp] (persist across time blocks)
    """
    @pl.when(pl.program_id(1) == 0)
    def _():
        h_ref[...] = jnp.zeros_like(h_ref)
        c_ref[...] = jnp.zeros_like(c_ref)

    # input-to-hidden for the whole time block: ONE MXU matmul, hoisted out of the loop
    pg_ref[...] = (jnp.dot(x_ref[0].astype(jnp.bfloat16), wih_ref[...],
                           preferred_element_type=jnp.float32) + b_ref[...])

    whh = whh_ref[...]

    @pl.loop(0, TT)
    def _(step):
        h = h_ref[...]
        z = pg_ref[pl.ds(step, 1), :] + jnp.dot(h.astype(jnp.bfloat16), whh,
                                                preferred_element_type=jnp.float32)
        i_g = jax.nn.sigmoid(z[:, 0 * Hp:1 * Hp])
        f_g = jax.nn.sigmoid(z[:, 1 * Hp:2 * Hp])
        g_g = jnp.tanh(z[:, 2 * Hp:3 * Hp])
        o_g = jax.nn.sigmoid(z[:, 3 * Hp:4 * Hp])
        c_new = f_g * c_ref[...] + i_g * g_g
        h_new = o_g * jnp.tanh(c_new)
        c_ref[...] = c_new
        h_ref[...] = h_new
        hall_ref[pl.ds(step, 1), :] = h_new

    # batched projection + log_softmax epilogue (one matmul, one dense 128-lane store)
    logits = (jnp.dot(hall_ref[...].astype(jnp.bfloat16), pw_ref[...],
                      preferred_element_type=jnp.float32) + pb_ref[...])
    m = jnp.max(logits, axis=-1, keepdims=True)
    zz = logits - m
    lse = jnp.log(jnp.sum(jnp.exp(zz), axis=-1, keepdims=True))
    o_ref[0] = zz - lse


def _final_proj_kernel(cos_ref, x_ref, lat_ref, noi_ref,
                       w1_ref, b1_ref, w2_ref, b2_ref,
                       flow_ref, pf_ref, pn_ref):
    """projection (Linear -> GELU -> Linear) fused with flow / prediction-noise math.
    All three outputs are lane-dense (CP = 128-padded codec channels)."""
    t = cos_ref[0]                                    # [1, 1]
    lat = lat_ref[0]
    noi = noi_ref[0]
    flow_ref[0] = lat - noi
    h = _gelu_tanh(jnp.dot(x_ref[0].astype(jnp.bfloat16), w1_ref[...],
                           preferred_element_type=jnp.float32) + b1_ref[...])
    y = jnp.dot(h.astype(jnp.bfloat16), w2_ref[...],
                preferred_element_type=jnp.float32) + b2_ref[...]
    pf_ref[0] = y
    noised = t * lat + (1.0 - t) * noi                # recomputed (never stored to HBM)
    pn_ref[0] = noised - y * jnp.maximum(t, 1e-7)     # torch: .clamp(1e-07)


# ----------------------------------------------------------------------------
# Pallas wrappers
# ----------------------------------------------------------------------------
def fused_branches_forward(params, cos3, lat, noi, enc, f0, st3, TT):
    B, T_pad, CP = lat.shape
    E = enc.shape[-1]
    DP = st3.shape[-1]
    grid = (B, T_pad // TT)
    bmap = lambda b, tb: (b, 0, 0)
    tmap = lambda b, tb: (b, tb, 0)
    weights = [params[k] for k in ("prenet_w", "prenet_b", "enc_w1", "enc_b1",
                                   "enc_w2", "enc_b2", "f0_w1", "f0_b1",
                                   "f0_w2", "f0_b2")]
    block_bytes = 4 * (TT * (2 * CP + E + 1 + DP) + DP + 1)
    weight_bytes = sum(int(v.size) * v.dtype.itemsize for v in weights)
    vmem = _vmem_limit(2 * block_bytes + 2 * weight_bytes)
    return pl.pallas_call(
        _fused_branches_kernel,
        out_shape=jax.ShapeDtypeStruct((B, T_pad, DP), jnp.float32),
        grid=grid,
        in_specs=[pl.BlockSpec((1, 1, 1), bmap),          # cosmap t
                  pl.BlockSpec((1, TT, CP), tmap),        # latents (lane-padded)
                  pl.BlockSpec((1, TT, CP), tmap),        # noises (lane-padded)
                  pl.BlockSpec((1, TT, E), tmap),         # encodings
                  pl.BlockSpec((1, TT, 1), tmap),         # f0
                  pl.BlockSpec((1, 1, DP), bmap)]         # step embedding (broadcast)
                 + [_full_spec(v.shape) for v in weights],
        out_specs=pl.BlockSpec((1, TT, DP), tmap),
        compiler_params=pltpu.CompilerParams(
            dimension_semantics=("parallel", "parallel"),
            vmem_limit_bytes=vmem),
    )(cos3, lat, noi, enc, f0, st3, *weights)


def token_predictor_forward(params, x_btd, TT):
    """x_btd: [B, T_pad, DP] -> log-prob tokens [B, T_pad, KP]."""
    B, T_pad, DP = x_btd.shape
    Hp = params["tp_whh"].shape[0]
    KP = params["tp_proj_w"].shape[1]
    grid = (B, T_pad // TT)
    tmap = lambda b, tb: (b, tb, 0)
    weights = [params[k] for k in ("tp_wih", "tp_whh", "tp_b",
                                   "tp_proj_w", "tp_proj_b")]
    block_bytes = 4 * TT * (DP + KP)
    weight_bytes = sum(int(v.size) * v.dtype.itemsize for v in weights)
    scratch_bytes = 4 * (TT * 4 * Hp + TT * Hp + 2 * Hp)
    vmem = _vmem_limit(2 * block_bytes + 2 * weight_bytes + scratch_bytes)
    kernel = functools.partial(_token_predictor_kernel, TT=TT, Hp=Hp)
    return pl.pallas_call(
        kernel,
        out_shape=jax.ShapeDtypeStruct((B, T_pad, KP), jnp.float32),
        grid=grid,
        in_specs=[pl.BlockSpec((1, TT, DP), tmap)]
                 + [_full_spec(v.shape) for v in weights],
        out_specs=pl.BlockSpec((1, TT, KP), tmap),
        scratch_shapes=[pltpu.VMEM((TT, 4 * Hp), jnp.float32),  # hoisted x@W_ih gates
                        pltpu.VMEM((TT, Hp), jnp.float32),      # h for all steps
                        pltpu.VMEM((1, Hp), jnp.float32),       # h carry across blocks
                        pltpu.VMEM((1, Hp), jnp.float32)],      # c carry across blocks
        compiler_params=pltpu.CompilerParams(
            dimension_semantics=("parallel", "arbitrary"),
            vmem_limit_bytes=vmem),
    )(x_btd, *weights)


def final_projection_forward(params, cos3, x_btd, lat, noi, TT):
    B, T_pad, DP = x_btd.shape
    CP = lat.shape[-1]
    grid = (B, T_pad // TT)
    bmap = lambda b, tb: (b, 0, 0)
    tmap = lambda b, tb: (b, tb, 0)
    weights = [params[k] for k in ("proj_w1", "proj_b1", "proj_w2", "proj_b2")]
    block_bytes = 4 * TT * (DP + 5 * CP)
    weight_bytes = sum(int(v.size) * v.dtype.itemsize for v in weights)
    vmem = _vmem_limit(2 * block_bytes + 2 * weight_bytes)
    out_shape = tuple(jax.ShapeDtypeStruct((B, T_pad, CP), jnp.float32) for _ in range(3))
    out_specs = tuple(pl.BlockSpec((1, TT, CP), tmap) for _ in range(3))
    return pl.pallas_call(
        _final_proj_kernel,
        out_shape=out_shape,
        grid=grid,
        in_specs=[pl.BlockSpec((1, 1, 1), bmap),          # cosmap t
                  pl.BlockSpec((1, TT, DP), tmap),        # x
                  pl.BlockSpec((1, TT, CP), tmap),        # latents
                  pl.BlockSpec((1, TT, CP), tmap)]        # noises
                 + [_full_spec(v.shape) for v in weights],
        out_specs=out_specs,
        compiler_params=pltpu.CompilerParams(
            dimension_semantics=("parallel", "parallel"),
            vmem_limit_bytes=vmem),
    )(cos3, x_btd, lat, noi, *weights)


# ----------------------------------------------------------------------------
# Full forward (matches Diffusion.forward with Network_Prediction == 'Flow')
# ----------------------------------------------------------------------------
def diffusion_forward(params, encodings, f0s, latents, lengths, prompts,
                      prompt_lengths, rng_key):
    B, C, T = latents.shape
    meta = params["meta"]
    n_tok = meta["tokens_out"]
    CP, DP = meta["CP"], meta["DP"]

    k_t, k_n = jax.random.split(rng_key)
    diffusion_times = jax.random.uniform(k_t, (B,), jnp.float32)
    cosmap = 1.0 - 1.0 / (jnp.tan(jnp.pi / 2.0 * diffusion_times) + 1.0)
    cos3 = cosmap.reshape(B, 1, 1)

    # channels-last layout, time- and lane-padded once; every kernel reads these directly.
    T_pad, TT = _pick_time_tile(T)

    def pad_tl(a_btc, lanes):
        return jnp.pad(a_btc, ((0, 0), (0, T_pad - T), (0, lanes - a_btc.shape[-1])))

    lat = pad_tl(jnp.transpose(latents, (0, 2, 1)).astype(jnp.float32), CP)
    enc = pad_tl(jnp.transpose(encodings, (0, 2, 1)).astype(jnp.float32),
                 encodings.shape[1])
    noi_btc = jax.random.normal(k_n, (B, T, C), jnp.float32)
    noi = pad_tl(noi_btc, CP)
    f0 = pad_tl(f0s.astype(jnp.float32)[..., None], 1)

    # step FFN in plain XLA: ~[B, 32] of work, not worth a pallas launch + HBM trip.
    se_arg = cosmap[:, None] * params["div_term"][None, :]
    se = jnp.concatenate([jnp.sin(se_arg), jnp.cos(se_arg)], axis=1)        # [B, D]
    hs = _gelu_tanh(se @ params["step_w1"] + params["step_b1"])
    st3 = (hs @ params["step_w2"] + params["step_b2"]).reshape(B, 1, DP)

    # K2: noising + prenet + encoding_ffn + f0_ffn + step broadcast + sum, all fused.
    x = fused_branches_forward(params, cos3, lat, noi, enc, f0, st3, TT)
    # TODO(synk): FFT_Block definition is not provided in the reference module;
    # the transformer block stack is an identity pass-through here.

    # K3: token predictor (LSTM recurrence + projection + log_softmax).
    tok = token_predictor_forward(params, x, TT)                            # [B, T_pad, KP]
    prediction_tokens = jnp.transpose(tok[:, :T, :n_tok], (0, 2, 1))        # [B, n_tok, T]

    # K4: output projection fused with flow / prediction-noise epilogue (lane-dense).
    flows_p, pflows_p, pnoises_p = final_projection_forward(params, cos3, x, lat, noi, TT)

    to_nct = lambda a: jnp.transpose(a[:, :T, :C], (0, 2, 1))
    flows = to_nct(flows_p)
    prediction_flows = to_nct(pflows_p)
    prediction_noises = to_nct(pnoises_p)
    noises = jnp.transpose(noi_btc, (0, 2, 1))
    return flows, prediction_flows, noises, prediction_noises, prediction_tokens


# ----------------------------------------------------------------------------
# Deterministic parameter init (weights pre-padded lane-dense at init time)
# ----------------------------------------------------------------------------
def init_params(key, *, codec, enc_size, dsize, tp_size, tokens):
    D, H = dsize, tp_size
    DP = _round_up(D, 128)            # lane-dense model width carried between kernels
    H4 = _round_up(4 * D, 128)        # lane-dense FFN hidden width
    CP = _round_up(codec, 128)        # lane-dense codec channels (K4 outputs)
    Hp = _round_up(H, 128)            # lane-dense LSTM hidden width
    KP = _round_up(tokens + 1, 128)   # lane-dense token logits
    ks = jax.random.split(key, 16)

    def w(k, shape, pad_shape, dtype=jnp.bfloat16):
        v = 0.02 * jax.random.normal(k, shape, jnp.float32)
        return _pad_to(v, pad_shape).astype(dtype)

    z = lambda shape: jnp.zeros(shape, jnp.float32)
    half = D // 2
    div_term = jnp.exp(jnp.arange(half, dtype=jnp.float32)
                       * (-(math.log(10000.0) / (half - 1))))

    # concatenated, lane-padded LSTM gate weights (torch gate order i, f, g, o)
    def gates(k, in_dim, in_pad):
        kk = jax.random.split(k, 4)
        mats = [_pad_to(0.02 * jax.random.normal(kk[g], (in_dim, H), jnp.float32),
                        (in_pad, Hp)) for g in range(4)]
        return jnp.concatenate(mats, axis=1).astype(jnp.bfloat16)   # [in_pad, 4*Hp]

    # token projection bias: -1e30 on padded lanes so they never touch the
    # log-softmax normalizer (padded weight columns are zero).
    tp_proj_b = jnp.full((1, KP), -1e30, jnp.float32).at[:, :tokens + 1].set(0.0)

    return {
        "meta": {"tokens_out": tokens + 1, "D": D, "DP": DP, "CP": CP,
                 "Hp": Hp, "KP": KP},
        "div_term": div_term,
        "prenet_w": w(ks[0], (codec, D), (CP, DP)),    "prenet_b": z((1, DP)),
        "enc_w1": w(ks[1], (enc_size, 4 * D), (enc_size, H4)), "enc_b1": z((1, H4)),
        "enc_w2": w(ks[2], (4 * D, D), (H4, DP)),      "enc_b2": z((1, DP)),
        "f0_w1": _pad_to(0.02 * jax.random.normal(ks[3], (1, 4 * D), jnp.float32),
                         (1, H4)),                      "f0_b1": z((1, H4)),
        "f0_w2": w(ks[4], (4 * D, D), (H4, DP)),       "f0_b2": z((1, DP)),
        # step FFN weights are consumed by plain XLA (kept f32, DP-padded output cols)
        "step_w1": 0.02 * jax.random.normal(ks[5], (D, 4 * D), jnp.float32),
        "step_b1": z((1, 4 * D)),
        "step_w2": _pad_to(0.02 * jax.random.normal(ks[6], (4 * D, D), jnp.float32),
                           (4 * D, DP)),
        "step_b2": z((1, DP)),
        "proj_w1": w(ks[7], (D, D), (DP, DP)),         "proj_b1": z((1, DP)),
        # reference uses zero-init gain here; random kept so the test is non-trivial
        "proj_w2": w(ks[8], (D, codec), (DP, CP)),     "proj_b2": z((1, CP)),
        # token predictor: concatenated gates, bf16 matmul operands, lane-dense Hp/KP.
        # Single fused bias == torch (b_ih + b_hh).
        "tp_wih": gates(ks[9], D, DP),                 # [DP, 4*Hp]
        "tp_whh": gates(ks[10], H, Hp),                # [Hp, 4*Hp]
        "tp_b": z((1, 4 * Hp)),
        "tp_proj_w": w(ks[11], (H, tokens + 1), (Hp, KP)),
        "tp_proj_b": tp_proj_b,
    }


# ----------------------------------------------------------------------------
if __name__ == "__main__":
    # Small, consistent hyperparameters (Audio_Codec_Size == Diffusion.Size, see note).
    B, T, PT = 2, 16, 8
    CODEC = 32      # Audio_Codec_Size == Diffusion.Size
    ENC = 16        # Encoder.Size
    D = 32          # Diffusion.Size
    H = 16          # Token_Predictor.Size
    TOKENS = 10

    key = jax.random.PRNGKey(0)
    kp, ke, kf, kl, kpr, kd = jax.random.split(key, 6)

    params = init_params(kp, codec=CODEC, enc_size=ENC, dsize=D, tp_size=H,
                         tokens=TOKENS)

    encodings = jax.random.normal(ke, (B, ENC, T), jnp.float32)
    f0s = 100.0 + 200.0 * jax.random.uniform(kf, (B, T), jnp.float32)
    latents = jax.random.normal(kl, (B, CODEC, T), jnp.float32)
    lengths = jnp.full((B,), T, jnp.int32)
    prompts = jax.random.normal(kpr, (B, ENC, PT), jnp.float32)
    prompt_lengths = jnp.full((B,), PT, jnp.int32)

    outs = diffusion_forward(params, encodings, f0s, latents, lengths,
                             prompts, prompt_lengths, kd)
    outs = jax.block_until_ready(outs)

    flows, pred_flows, noises, pred_noises, pred_tokens = outs
    assert flows.shape == (B, CODEC, T)
    assert pred_flows.shape == (B, CODEC, T)
    assert noises.shape == (B, CODEC, T)
    assert pred_noises.shape == (B, CODEC, T)
    assert pred_tokens.shape == (B, TOKENS + 1, T)
    for o in outs:
        assert bool(jnp.all(jnp.isfinite(o)))

    print("KERNEL_OK")
</pallas_src>

<mosaic_0001>
module attributes {stable_mosaic.version = 11 : i64} {
  func.func @_fused_branches_kernel(%arg0: i32, %arg1: i32, %arg2: memref<1x1x1xf32, #tpu.memory_space<vmem>>, %arg3: memref<1x16x128xf32, #tpu.memory_space<vmem>>, %arg4: memref<1x16x128xf32, #tpu.memory_space<vmem>>, %arg5: memref<1x16x16xf32, #tpu.memory_space<vmem>>, %arg6: memref<1x16x1xf32, #tpu.memory_space<vmem>>, %arg7: memref<1x1x128xf32, #tpu.memory_space<vmem>>, %arg8: memref<128x128xbf16, #tpu.memory_space<vmem>>, %arg9: memref<1x128xf32, #tpu.memory_space<vmem>>, %arg10: memref<16x128xbf16, #tpu.memory_space<vmem>>, %arg11: memref<1x128xf32, #tpu.memory_space<vmem>>, %arg12: memref<128x128xbf16, #tpu.memory_space<vmem>>, %arg13: memref<1x128xf32, #tpu.memory_space<vmem>>, %arg14: memref<1x128xf32, #tpu.memory_space<vmem>>, %arg15: memref<1x128xf32, #tpu.memory_space<vmem>>, %arg16: memref<128x128xbf16, #tpu.memory_space<vmem>>, %arg17: memref<1x128xf32, #tpu.memory_space<vmem>>, %arg18: memref<1x16x128xf32, #tpu.memory_space<vmem>>) attributes {dimension_semantics = [#tpu.dimension_semantics<parallel>, #tpu.dimension_semantics<parallel>], iteration_bounds = array<i64: 2, 1>, scalar_prefetch = 0 : i64, scratch_operands = 0 : i64, tpu.core_type = #tpu.core_type<tc>, window_params = [{transform_indices = @transform_0, window_bounds = array<i64: 1, 1, 1>}, {transform_indices = @transform_1, window_bounds = array<i64: 1, 16, 128>}, {transform_indices = @transform_2, window_bounds = array<i64: 1, 16, 128>}, {transform_indices = @transform_3, window_bounds = array<i64: 1, 16, 16>}, {transform_indices = @transform_4, window_bounds = array<i64: 1, 16, 1>}, {transform_indices = @transform_5, window_bounds = array<i64: 1, 1, 128>}, {pipeline_mode = #tpu.pipeline_mode<synchronous>, transform_indices = @transform_6, window_bounds = array<i64: 128, 128>}, {pipeline_mode = #tpu.pipeline_mode<synchronous>, transform_indices = @transform_7, window_bounds = array<i64: 1, 128>}, {pipeline_mode = #tpu.pipeline_mode<synchronous>, transform_indices = @transform_8, window_bounds = array<i64: 16, 128>}, {pipeline_mode = #tpu.pipeline_mode<synchronous>, transform_indices = @transform_9, window_bounds = array<i64: 1, 128>}, {pipeline_mode = #tpu.pipeline_mode<synchronous>, transform_indices = @transform_10, window_bounds = array<i64: 128, 128>}, {pipeline_mode = #tpu.pipeline_mode<synchronous>, transform_indices = @transform_11, window_bounds = array<i64: 1, 128>}, {pipeline_mode = #tpu.pipeline_mode<synchronous>, transform_indices = @transform_12, window_bounds = array<i64: 1, 128>}, {pipeline_mode = #tpu.pipeline_mode<synchronous>, transform_indices = @transform_13, window_bounds = array<i64: 1, 128>}, {pipeline_mode = #tpu.pipeline_mode<synchronous>, transform_indices = @transform_14, window_bounds = array<i64: 128, 128>}, {pipeline_mode = #tpu.pipeline_mode<synchronous>, transform_indices = @transform_15, window_bounds = array<i64: 1, 128>}, {transform_indices = @transform_16, window_bounds = array<i64: 1, 16, 128>}]} {
    %c0 = arith.constant 0 : index
    %c0_0 = arith.constant 0 : index
    %c0_1 = arith.constant 0 : index
    %0 = vector.load %arg2[%c0, %c0_0, %c0_1] : memref<1x1x1xf32, #tpu.memory_space<vmem>>, vector<1x1x1xf32>
    %1 = vector.shape_cast %0 : vector<1x1x1xf32> to vector<1x1xf32>
    %c0_2 = arith.constant 0 : index
    %c0_3 = arith.constant 0 : index
    %c0_4 = arith.constant 0 : index
    %2 = vector.load %arg3[%c0_2, %c0_3, %c0_4] : memref<1x16x128xf32, #tpu.memory_space<vmem>>, vector<1x16x128xf32>
    %3 = vector.shape_cast %2 : vector<1x16x128xf32> to vector<16x128xf32>
    %4 = vector.broadcast %1 : vector<1x1xf32> to vector<16x128xf32>
    %5 = arith.mulf %4, %3 : vector<16x128xf32>
    %cst = arith.constant 1.000000e+00 : f32
    %6 = vector.broadcast %cst : f32 to vector<1x1xf32>
    %7 = arith.subf %6, %1 : vector<1x1xf32>
    %c0_5 = arith.constant 0 : index
    %c0_6 = arith.constant 0 : index
    %c0_7 = arith.constant 0 : index
    %8 = vector.load %arg4[%c0_5, %c0_6, %c0_7] : memref<1x16x128xf32, #tpu.memory_space<vmem>>, vector<1x16x128xf32>
    %9 = vector.shape_cast %8 : vector<1x16x128xf32> to vector<16x128xf32>
    %10 = vector.broadcast %7 : vector<1x1xf32> to vector<16x128xf32>
    %11 = arith.mulf %10, %9 : vector<16x128xf32>
    %12 = arith.addf %5, %11 : vector<16x128xf32>
    %13 = arith.truncf %12 : vector<16x128xf32> to vector<16x128xbf16>
    %c0_8 = arith.constant 0 : index
    %c0_9 = arith.constant 0 : index
    %14 = vector.load %arg8[%c0_8, %c0_9] : memref<128x128xbf16, #tpu.memory_space<vmem>>, vector<128x128xbf16>
    %cst_10 = arith.constant dense<0.000000e+00> : vector<16x128xf32>
    %15 = tpu.matmul %13, %14, %cst_10 {dimension_numbers = #tpu.dot_dimension_numbers<[1], [0], [0], [1], [0, 0, 1, 1], [], []>} : vector<16x128xbf16>, vector<128x128xbf16>, vector<16x128xf32> -> vector<16x128xf32>
    %c0_11 = arith.constant 0 : index
    %c0_12 = arith.constant 0 : index
    %16 = vector.load %arg9[%c0_11, %c0_12] : memref<1x128xf32, #tpu.memory_space<vmem>>, vector<1x128xf32>
    %17 = vector.broadcast %16 : vector<1x128xf32> to vector<16x128xf32>
    %18 = arith.addf %15, %17 : vector<16x128xf32>
    %cst_13 = arith.constant 5.000000e-01 : f32
    %19 = vector.broadcast %cst_13 : f32 to vector<16x128xf32>
    %20 = arith.mulf %19, %18 : vector<16x128xf32>
    %cst_14 = arith.constant 4.471500e-02 : f32
    %21 = vector.broadcast %cst_14 : f32 to vector<16x128xf32>
    %22 = arith.mulf %21, %18 : vector<16x128xf32>
    %23 = arith.mulf %22, %18 : vector<16x128xf32>
    %24 = arith.mulf %23, %18 : vector<16x128xf32>
    %25 = arith.addf %18, %24 : vector<16x128xf32>
    %cst_15 = arith.constant 0.797884583 : f32
    %26 = vector.broadcast %cst_15 : f32 to vector<16x128xf32>
    %27 = arith.mulf %26, %25 : vector<16x128xf32>
    %28 = math.tanh %27 : vector<16x128xf32>
    %cst_16 = arith.constant 1.000000e+00 : f32
    %29 = vector.broadcast %cst_16 : f32 to vector<16x128xf32>
    %30 = arith.addf %29, %28 : vector<16x128xf32>
    %31 = arith.mulf %20, %30 : vector<16x128xf32>
    %c0_17 = arith.constant 0 : index
    %c0_18 = arith.constant 0 : index
    %c0_19 = arith.constant 0 : index
    %32 = vector.load %arg5[%c0_17, %c0_18, %c0_19] : memref<1x16x16xf32, #tpu.memory_space<vmem>>, vector<1x16x16xf32>
    %33 = vector.shape_cast %32 : vector<1x16x16xf32> to vector<16x16xf32>
    %34 = arith.truncf %33 : vector<16x16xf32> to vector<16x16xbf16>
    %c0_20 = arith.constant 0 : index
    %c0_21 = arith.constant 0 : index
    %35 = vector.load %arg10[%c0_20, %c0_21] : memref<16x128xbf16, #tpu.memory_space<vmem>>, vector<16x128xbf16>
    %cst_22 = arith.constant dense<0.000000e+00> : vector<16x128xf32>
    %36 = tpu.matmul %34, %35, %cst_22 {dimension_numbers = #tpu.dot_dimension_numbers<[1], [0], [0], [1], [0, 0, 1, 1], [], []>} : vector<16x16xbf16>, vector<16x128xbf16>, vector<16x128xf32> -> vector<16x128xf32>
    %c0_23 = arith.constant 0 : index
    %c0_24 = arith.constant 0 : index
    %37 = vector.load %arg11[%c0_23, %c0_24] : memref<1x128xf32, #tpu.memory_space<vmem>>, vector<1x128xf32>
    %38 = vector.broadcast %37 : vector<1x128xf32> to vector<16x128xf32>
    %39 = arith.addf %36, %38 : vector<16x128xf32>
    %cst_25 = arith.constant 5.000000e-01 : f32
    %40 = vector.broadcast %cst_25 : f32 to vector<16x128xf32>
    %41 = arith.mulf %40, %39 : vector<16x128xf32>
    %cst_26 = arith.constant 4.471500e-02 : f32
    %42 = vector.broadcast %cst_26 : f32 to vector<16x128xf32>
    %43 = arith.mulf %42, %39 : vector<16x128xf32>
    %44 = arith.mulf %43, %39 : vector<16x128xf32>
    %45 = arith.mulf %44, %39 : vector<16x128xf32>
    %46 = arith.addf %39, %45 : vector<16x128xf32>
    %cst_27 = arith.constant 0.797884583 : f32
    %47 = vector.broadcast %cst_27 : f32 to vector<16x128xf32>
    %48 = arith.mulf %47, %46 : vector<16x128xf32>
    %49 = math.tanh %48 : vector<16x128xf32>
    %cst_28 = arith.constant 1.000000e+00 : f32
    %50 = vector.broadcast %cst_28 : f32 to vector<16x128xf32>
    %51 = arith.addf %50, %49 : vector<16x128xf32>
    %52 = arith.mulf %41, %51 : vector<16x128xf32>
    %53 = arith.truncf %52 : vector<16x128xf32> to vector<16x128xbf16>
    %c0_29 = arith.constant 0 : index
    %c0_30 = arith.constant 0 : index
    %54 = vector.load %arg12[%c0_29, %c0_30] : memref<128x128xbf16, #tpu.memory_space<vmem>>, vector<128x128xbf16>
    %cst_31 = arith.constant dense<0.000000e+00> : vector<16x128xf32>
    %55 = tpu.matmul %53, %54, %cst_31 {dimension_numbers = #tpu.dot_dimension_numbers<[1], [0], [0], [1], [0, 0, 1, 1], [], []>} : vector<16x128xbf16>, vector<128x128xbf16>, vector<16x128xf32> -> vector<16x128xf32>
    %c0_32 = arith.constant 0 : index
    %c0_33 = arith.constant 0 : index
    %56 = vector.load %arg13[%c0_32, %c0_33] : memref<1x128xf32, #tpu.memory_space<vmem>>, vector<1x128xf32>
    %57 = vector.broadcast %56 : vector<1x128xf32> to vector<16x128xf32>
    %58 = arith.addf %55, %57 : vector<16x128xf32>
    %c0_34 = arith.constant 0 : index
    %c0_35 = arith.constant 0 : index
    %c0_36 = arith.constant 0 : index
    %59 = vector.load %arg6[%c0_34, %c0_35, %c0_36] : memref<1x16x1xf32, #tpu.memory_space<vmem>>, vector<1x16x1xf32>
    %60 = vector.shape_cast %59 : vector<1x16x1xf32> to vector<16x1xf32>
    %c0_37 = arith.constant 0 : index
    %c0_38 = arith.constant 0 : index
    %61 = vector.load %arg14[%c0_37, %c0_38] : memref<1x128xf32, #tpu.memory_space<vmem>>, vector<1x128xf32>
    %62 = vector.broadcast %60 : vector<16x1xf32> to vector<16x128xf32>
    %63 = vector.broadcast %61 : vector<1x128xf32> to vector<16x128xf32>
    %64 = arith.mulf %62, %63 : vector<16x128xf32>
    %c0_39 = arith.constant 0 : index
    %c0_40 = arith.constant 0 : index
    %65 = vector.load %arg15[%c0_39, %c0_40] : memref<1x128xf32, #tpu.memory_space<vmem>>, vector<1x128xf32>
    %66 = vector.broadcast %65 : vector<1x128xf32> to vector<16x128xf32>
    %67 = arith.addf %64, %66 : vector<16x128xf32>
    %cst_41 = arith.constant 5.000000e-01 : f32
    %68 = vector.broadcast %cst_41 : f32 to vector<16x128xf32>
    %69 = arith.mulf %68, %67 : vector<16x128xf32>
    %cst_42 = arith.constant 4.471500e-02 : f32
    %70 = vector.broadcast %cst_42 : f32 to vector<16x128xf32>
    %71 = arith.mulf %70, %67 : vector<16x128xf32>
    %72 = arith.mulf %71, %67 : vector<16x128xf32>
    %73 = arith.mulf %72, %67 : vector<16x128xf32>
    %74 = arith.addf %67, %73 : vector<16x128xf32>
    %cst_43 = arith.constant 0.797884583 : f32
    %75 = vector.broadcast %cst_43 : f32 to vector<16x128xf32>
    %76 = arith.mulf %75, %74 : vector<16x128xf32>
    %77 = math.tanh %76 : vector<16x128xf32>
    %cst_44 = arith.constant 1.000000e+00 : f32
    %78 = vector.broadcast %cst_44 : f32 to vector<16x128xf32>
    %79 = arith.addf %78, %77 : vector<16x128xf32>
    %80 = arith.mulf %69, %79 : vector<16x128xf32>
    %81 = arith.truncf %80 : vector<16x128xf32> to vector<16x128xbf16>
    %c0_45 = arith.constant 0 : index
    %c0_46 = arith.constant 0 : index
    %82 = vector.load %arg16[%c0_45, %c0_46] : memref<128x128xbf16, #tpu.memory_space<vmem>>, vector<128x128xbf16>
    %cst_47 = arith.constant dense<0.000000e+00> : vector<16x128xf32>
    %83 = tpu.matmul %81, %82, %cst_47 {dimension_numbers = #tpu.dot_dimension_numbers<[1], [0], [0], [1], [0, 0, 1, 1], [], []>} : vector<16x128xbf16>, vector<128x128xbf16>, vector<16x128xf32> -> vector<16x128xf32>
    %c0_48 = arith.constant 0 : index
    %c0_49 = arith.constant 0 : index
    %84 = vector.load %arg17[%c0_48, %c0_49] : memref<1x128xf32, #tpu.memory_space<vmem>>, vector<1x128xf32>
    %85 = vector.broadcast %84 : vector<1x128xf32> to vector<16x128xf32>
    %86 = arith.addf %83, %85 : vector<16x128xf32>
    %87 = arith.addf %31, %58 : vector<16x128xf32>
    %88 = arith.addf %87, %86 : vector<16x128xf32>
    %c0_50 = arith.constant 0 : index
    %c0_51 = arith.constant 0 : index
    %c0_52 = arith.constant 0 : index
    %89 = vector.load %arg7[%c0_50, %c0_51, %c0_52] : memref<1x1x128xf32, #tpu.memory_space<vmem>>, vector<1x1x128xf32>
    %90 = vector.shape_cast %89 : vector<1x1x128xf32> to vector<1x128xf32>
    %91 = vector.broadcast %90 : vector<1x128xf32> to vector<16x128xf32>
    %92 = arith.addf %88, %91 : vector<16x128xf32>
    %c0_53 = arith.constant 0 : index
    %c0_54 = arith.constant 0 : index
    %c0_55 = arith.constant 0 : index
    %93 = vector.load %arg18[%c0_53, %c0_54, %c0_55] : memref<1x16x128xf32, #tpu.memory_space<vmem>>, vector<1x16x128xf32>
    %94 = vector.shape_cast %93 : vector<1x16x128xf32> to vector<16x128xf32>
    %95 = vector.shape_cast %92 : vector<16x128xf32> to vector<1x16x128xf32>
    tpu.vector_store %arg18[%c0_53, %c0_54, %c0_55], %95 {strides = array<i32>} : memref<1x16x128xf32, #tpu.memory_space<vmem>>, vector<1x16x128xf32>,
    return
  }
  func.func @transform_0(%arg0: i32, %arg1: i32) -> (i32, i32, i32) {
    %c0_i32 = arith.constant 0 : i32
    %c0_i32_0 = arith.constant 0 : i32
    %c0_i32_1 = arith.constant 0 : i32
    return %arg0, %c0_i32, %c0_i32_0 : i32, i32, i32
  }
  func.func @transform_1(%arg0: i32, %arg1: i32) -> (i32, i32, i32) {
    %c0_i32 = arith.constant 0 : i32
    %c0_i32_0 = arith.constant 0 : i32
    return %arg0, %arg1, %c0_i32 : i32, i32, i32
  }
  func.func @transform_2(%arg0: i32, %arg1: i32) -> (i32, i32, i32) {
    %c0_i32 = arith.constant 0 : i32
    %c0_i32_0 = arith.constant 0 : i32
    return %arg0, %arg1, %c0_i32 : i32, i32, i32
  }
  func.func @transform_3(%arg0: i32, %arg1: i32) -> (i32, i32, i32) {
    %c0_i32 = arith.constant 0 : i32
    %c0_i32_0 = arith.constant 0 : i32
    return %arg0, %arg1, %c0_i32 : i32, i32, i32
  }
  func.func @transform_4(%arg0: i32, %arg1: i32) -> (i32, i32, i32) {
    %c0_i32 = arith.constant 0 : i32
    %c0_i32_0 = arith.constant 0 : i32
    return %arg0, %arg1, %c0_i32 : i32, i32, i32
  }
  func.func @transform_5(%arg0: i32, %arg1: i32) -> (i32, i32, i32) {
    %c0_i32 = arith.constant 0 : i32
    %c0_i32_0 = arith.constant 0 : i32
    %c0_i32_1 = arith.constant 0 : i32
    return %arg0, %c0_i32, %c0_i32_0 : i32, i32, i32
  }
  func.func @transform_6(%arg0: i32, %arg1: i32) -> (i32, i32) {
    %c0_i32 = arith.constant 0 : i32
    %c0_i32_0 = arith.constant 0 : i32
    %c0_i32_1 = arith.constant 0 : i32
    return %c0_i32, %c0_i32_0 : i32, i32
  }
  func.func @transform_7(%arg0: i32, %arg1: i32) -> (i32, i32) {
    %c0_i32 = arith.constant 0 : i32
    %c0_i32_0 = arith.constant 0 : i32
    %c0_i32_1 = arith.constant 0 : i32
    return %c0_i32, %c0_i32_0 : i32, i32
  }
  func.func @transform_8(%arg0: i32, %arg1: i32) -> (i32, i32) {
    %c0_i32 = arith.constant 0 : i32
    %c0_i32_0 = arith.constant 0 : i32
    %c0_i32_1 = arith.constant 0 : i32
    return %c0_i32, %c0_i32_0 : i32, i32
  }
  func.func @transform_9(%arg0: i32, %arg1: i32) -> (i32, i32) {
    %c0_i32 = arith.constant 0 : i32
    %c0_i32_0 = arith.constant 0 : i32
    %c0_i32_1 = arith.constant 0 : i32
    return %c0_i32, %c0_i32_0 : i32, i32
  }
  func.func @transform_10(%arg0: i32, %arg1: i32) -> (i32, i32) {
    %c0_i32 = arith.constant 0 : i32
    %c0_i32_0 = arith.constant 0 : i32
    %c0_i32_1 = arith.constant 0 : i32
    return %c0_i32, %c0_i32_0 : i32, i32
  }
  func.func @transform_11(%arg0: i32, %arg1: i32) -> (i32, i32) {
    %c0_i32 = arith.constant 0 : i32
    %c0_i32_0 = arith.constant 0 : i32
    %c0_i32_1 = arith.constant 0 : i32
    return %c0_i32, %c0_i32_0 : i32, i32
  }
  func.func @transform_12(%arg0: i32, %arg1: i32) -> (i32, i32) {
    %c0_i32 = arith.constant 0 : i32
    %c0_i32_0 = arith.constant 0 : i32
    %c0_i32_1 = arith.constant 0 : i32
    return %c0_i32, %c0_i32_0 : i32, i32
  }
  func.func @transform_13(%arg0: i32, %arg1: i32) -> (i32, i32) {
    %c0_i32 = arith.constant 0 : i32
    %c0_i32_0 = arith.constant 0 : i32
    %c0_i32_1 = arith.constant 0 : i32
    return %c0_i32, %c0_i32_0 : i32, i32
  }
  func.func @transform_14(%arg0: i32, %arg1: i32) -> (i32, i32) {
    %c0_i32 = arith.constant 0 : i32
    %c0_i32_0 = arith.constant 0 : i32
    %c0_i32_1 = arith.constant 0 : i32
    return %c0_i32, %c0_i32_0 : i32, i32
  }
  func.func @transform_15(%arg0: i32, %arg1: i32) -> (i32, i32) {
    %c0_i32 = arith.constant 0 : i32
    %c0_i32_0 = arith.constant 0 : i32
    %c0_i32_1 = arith.constant 0 : i32
    return %c0_i32, %c0_i32_0 : i32, i32
  }
  func.func @transform_16(%arg0: i32, %arg1: i32) -> (i32, i32, i32) {
    %c0_i32 = arith.constant 0 : i32
    %c0_i32_0 = arith.constant 0 : i32
    return %arg0, %arg1, %c0_i32 : i32, i32, i32
  }
}

</mosaic_0001>

<llo_original>
// kernel: tpu_custom_call.1
$region0: #{tpu_custom_call.1}
  #allocation0 [shape = 'u32[]', space=smem, size = 0x4, offset = 0x4, fixed_abs, tag = 'smem constant byte address 0x4 - core index']
  #allocation1 [shape = 'u32[144,128]{1,0:T(1,128)}', space=vmem, size = 0x12000, scoped, tag = 'internal scratch']
  %s0 = inlined_call_operand.vmem [shape: f32[2,1,1], index: 0, kind: input, shape index: {}]
  %s1 = inlined_call_operand.hbm [shape: f32[2,16,128], index: 1, kind: input, shape index: {}]
  %s2 = inlined_call_operand.hbm [shape: f32[2,16,128], index: 2, kind: input, shape index: {}]
  %s3 = inlined_call_operand.hbm [shape: f32[2,16,16], index: 3, kind: input, shape index: {}]
  %s4 = inlined_call_operand.vmem [shape: f32[2,16,1], index: 4, kind: input, shape index: {}]
  %s5 = inlined_call_operand.vmem [shape: f32[2,1,128], index: 5, kind: input, shape index: {}]
  %s6 = inlined_call_operand.hbm [shape: bf16[128,128], index: 6, kind: input, shape index: {}]
  %s7 = inlined_call_operand.vmem [shape: f32[1,128], index: 7, kind: input, shape index: {}]
  %s8 = inlined_call_operand.vmem [shape: bf16[16,128], index: 8, kind: input, shape index: {}]
  %s9 = inlined_call_operand.hbm [shape: f32[1,128], index: 9, kind: input, shape index: {}]
  %s10 = inlined_call_operand.vmem [shape: bf16[128,128], index: 10, kind: input, shape index: {}]
  %s11 = inlined_call_operand.vmem [shape: f32[1,128], index: 11, kind: input, shape index: {}]
  %s12 = inlined_call_operand.vmem [shape: f32[1,128], index: 12, kind: input, shape index: {}]
  %s13 = inlined_call_operand.vmem [shape: f32[1,128], index: 13, kind: input, shape index: {}]
  %s14 = inlined_call_operand.hbm [shape: bf16[128,128], index: 14, kind: input, shape index: {}]
  %s15 = inlined_call_operand.vmem [shape: f32[1,128], index: 15, kind: input, shape index: {}]
  %s16 = inlined_call_operand.hbm [shape: f32[2,16,128], index: 16, kind: output, shape index: {}]
  %s17 = sld [smem:[#allocation0]]
  $region121: #{tpu_custom_call.1} parent=0
    _
  %s19 = ssub.s32 1, %s17
  %s20 = scalar_select 0, %s19, %s17
  $region1: #{tpu_custom_call.1} parent=0
    #allocation2 [shape = 'u8[16384]{0}', space=vmem, size = 0x4000, scoped, tag = 'input window, operand 1']
    #allocation3 [shape = 's32[2]{0}', space=sflag, size = 0x8, scoped, tag = 'scoped memory for tpu_custom_call.1']
    #allocation4 [shape = 's32[2]{0}', space=sflag, size = 0x8, scoped, tag = 'scoped memory for tpu_custom_call.1']
    #allocation5 [shape = 'u8[16384]{0}', space=vmem, size = 0x4000, scoped, tag = 'input window, operand 2']
    #allocation6 [shape = 's32[2]{0}', space=sflag, size = 0x8, scoped, tag = 'scoped memory for tpu_custom_call.1']
    #allocation7 [shape = 'u8[16384]{0}', space=vmem, size = 0x4000, scoped, tag = 'input window, operand 3']
    #allocation8 [shape = 'u8[32768]{0}', space=vmem, size = 0x8000, scoped, tag = 'input window, operand 6, single buffered']
    #allocation9 [shape = 's32[1]{0}', space=sflag, size = 0x4, scoped, tag = 'scoped memory for tpu_custom_call.1']
    #allocation10 [shape = 'u8[512]{0}', space=vmem, size = 0x400, scoped, tag = 'input window, operand 9, single buffered']
    #allocation11 [shape = 'u8[32768]{0}', space=vmem, size = 0x8000, scoped, tag = 'input window, operand 14, single buffered']
    #allocation12 [shape = 's32[1]{0}', space=sflag, size = 0x4, scoped, tag = 'scoped memory for tpu_custom_call.1']
    #allocation13 [shape = 'u8[16384]{0}', space=vmem, size = 0x4000, scoped, tag = 'output window, operand 0']
    %21 = vsyncpa [#allocation3], 0
    %s22 = scalar_lea.sflag [#allocation3], 1
    %23 = vsyncpa %s22, 0
    %24 = vsyncpa [#allocation6], 0
    %s25 = scalar_lea.sflag [#allocation6], 1
    %26 = vsyncpa %s25, 0
    %27 = vsyncpa [#allocation9], 0
    %28 = vsyncpa [#allocation12], 0
    %29 = vsyncpa [#allocation4], 0
    %s30 = scalar_lea.sflag [#allocation4], 1
    %31 = vsyncpa %s30, 0
    loop: start=0, step=1, limit=4
    $region2: #{tpu_custom_call.1} parent=1 // loop_pre_header
      _
    $region3: #{tpu_custom_call.1} parent=1 // loop_header
      %s33 = sphi 0, %s37
      %p34 = scmp.ge.s32.totalorder %s33, 4
      %s40 = sphi 0, %s52
      %s41 = sphi 0, %s48
      %s42 = sphi 0, %s40
      %s43 = sphi 0, %s41
      %s44 = sphi 0, %s42
      %s45 = sphi 0, %s43
      %s55 = sphi 0, %s57
      %s58 = sphi 0, %s55
      %s59 = sphi 0, %s58
      %s75 = sphi 0, %s59
      %s83 = sphi 0, %s85
      %s86 = sphi 0, %s83
      %s87 = sphi 0, %s86
      %s103 = sphi 0, %s87
      %s111 = sphi 0, %s113
      %s114 = sphi 0, %s111
      %s115 = sphi 0, %s114
      %s131 = sphi 0, %s115
      %s139 = sphi 0, %s141
      %s142 = sphi 0, %s139
      %s143 = sphi 0, %s142
      %s159 = sphi 0, %s143
      %s167 = sphi 0, %s169
      %s170 = sphi 0, %s167
      %s171 = sphi 0, %s170
      %s187 = sphi 0, %s171
      %s193 = sphi 0, %s195
      %s196 = sphi 0, %s193
      %s197 = sphi 0, %s196
      %s213 = sphi 0, %s197
      %s217 = sphi 0, %s217
      %s219 = sphi 0, %s217
      %s220 = sphi 0, %s219
      %s234 = sphi 0, %s220
      %s238 = sphi 0, %s238
      %s240 = sphi 0, %s238
      %s241 = sphi 0, %s240
      %s255 = sphi 0, %s241
      %s259 = sphi 0, %s259
      %s261 = sphi 0, %s259
      %s262 = sphi 0, %s261
      %s276 = sphi 0, %s262
      %s280 = sphi 0, %s280
      %s282 = sphi 0, %s280
      %s283 = sphi 0, %s282
      %s297 = sphi 0, %s283
      %s301 = sphi 0, %s301
      %s303 = sphi 0, %s301
      %s304 = sphi 0, %s303
      %s318 = sphi 0, %s304
      %s322 = sphi 0, %s322
      %s324 = sphi 0, %s322
      %s325 = sphi 0, %s324
      %s339 = sphi 0, %s325
      %s343 = sphi 0, %s343
      %s345 = sphi 0, %s343
      %s346 = sphi 0, %s345
      %s360 = sphi 0, %s346
      %s364 = sphi 0, %s364
      %s366 = sphi 0, %s364
      %s367 = sphi 0, %s366
      %s381 = sphi 0, %s367
      %s385 = sphi 0, %s385
      %s387 = sphi 0, %s385
      %s388 = sphi 0, %s387
      %s402 = sphi 0, %s388
      %s406 = sphi 0, %s406
      %s408 = sphi 0, %s406
      %s409 = sphi 0, %s408
      %s423 = sphi 0, %s409
      %s431 = sphi 0, %s433
      %s434 = sphi 0, %s431
      %s435 = sphi 0, %s434
      %s451 = sphi 0, %s435
    $region4: #{tpu_custom_call.1} parent=1 // loop_header_branch
      %36 = sbr.rel (%p34) target = $region8
    $region5: #{tpu_custom_call.1} parent=1 // loop_body
      %s38 = ssub.s32 %s33, 1
      %s39 = ssub.s32 %s33, 2
      %s46 = sadd.s32 1, %s41
      %p47 = scmp.ge.s32.totalorder %s46, 1
      %s48 = scalar_select %p47, 0, %s46
      %s49 = sadd.s32 1, %s40
      %s50 = scalar_select %p47, %s49, %s40
      %p51 = scmp.ge.s32.totalorder %s50, 2
      %s52 = scalar_select %p51, 0, %s50
      %s53 = ssub.s32 %s40, %s52
      %p54 = scmp.eq.s32.totalorder %s53, 0
      %s56 = sadd.s32 %s55, 1
      %s57 = scalar_select %p54, %s55, %s56
      %p60 = pneg %p54
      %p61 = scmp.eq.s32.totalorder %s33, 1
      %p62 = por %p60, %p61
      %p63 = scmp.ne.s32.totalorder %s55, %s58
      %p64 = scmp.eq.s32.totalorder %s33, 0
      %p65 = por %p63, %p64
      %p66 = scmp.ne.s32.totalorder %s55, %s58
      %p67 = scmp.eq.s32.totalorder %s38, 1
      %p68 = por %p66, %p67
      %p69 = scmp.ne.s32.totalorder %s58, %s59
      %p70 = scmp.eq.s32.totalorder %s38, 0
      %p71 = por %p69, %p70
      %p72 = scmp.ne.s32.totalorder %s58, %s59
      %p73 = scmp.eq.s32.totalorder %s39, 1
      %p74 = por %p72, %p73
      %p76 = scmp.ne.s32.totalorder %s59, %s75
      %p77 = scmp.eq.s32.totalorder %s39, 0
      %p78 = por %p76, %p77
      %s79 = ssub.s32 %s40, %s52
      %s80 = ssub.s32 %s41, %s48
      %s81 = sor.u32 %s79, %s80
      %p82 = scmp.eq.s32.totalorder %s81, 0
      %s84 = sadd.s32 %s83, 1
      %s85 = scalar_select %p82, %s83, %s84
      %p88 = pneg %p82
      %p89 = scmp.eq.s32.totalorder %s33, 1
      %p90 = por %p88, %p89
      %p91 = scmp.ne.s32.totalorder %s83, %s86
      %p92 = scmp.eq.s32.totalorder %s33, 0
      %p93 = por %p91, %p92
      %p94 = scmp.ne.s32.totalorder %s83, %s86
      %p95 = scmp.eq.s32.totalorder %s38, 1
      %p96 = por %p94, %p95
      %p97 = scmp.ne.s32.totalorder %s86, %s87
      %p98 = scmp.eq.s32.totalorder %s38, 0
      %p99 = por %p97, %p98
      %p100 = scmp.ne.s32.totalorder %s86, %s87
      %p101 = scmp.eq.s32.totalorder %s39, 1
      %p102 = por %p100, %p101
      %p104 = scmp.ne.s32.totalorder %s87, %s103
      %p105 = scmp.eq.s32.totalorder %s39, 0
      %p106 = por %p104, %p105
      %s107 = ssub.s32 %s40, %s52
      %s108 = ssub.s32 %s41, %s48
      %s109 = sor.u32 %s107, %s108
      %p110 = scmp.eq.s32.totalorder %s109, 0
      %s112 = sadd.s32 %s111, 1
      %s113 = scalar_select %p110, %s111, %s112
      %p116 = pneg %p110
      %p117 = scmp.eq.s32.totalorder %s33, 1
      %p118 = por %p116, %p117
      %p119 = scmp.ne.s32.totalorder %s111, %s114
      %p120 = scmp.eq.s32.totalorder %s33, 0
      %p121 = por %p119, %p120
      %p122 = scmp.ne.s32.totalorder %s111, %s114
      %p123 = scmp.eq.s32.totalorder %s38, 1
      %p124 = por %p122, %p123
      %p125 = scmp.ne.s32.totalorder %s114, %s115
      %p126 = scmp.eq.s32.totalorder %s38, 0
      %p127 = por %p125, %p126
      %p128 = scmp.ne.s32.totalorder %s114, %s115
      %p129 = scmp.eq.s32.totalorder %s39, 1
      %p130 = por %p128, %p129
      %p132 = scmp.ne.s32.totalorder %s115, %s131
      %p133 = scmp.eq.s32.totalorder %s39, 0
      %p134 = por %p132, %p133
      %s135 = ssub.s32 %s40, %s52
      %s136 = ssub.s32 %s41, %s48
      %s137 = sor.u32 %s135, %s136
      %p138 = scmp.eq.s32.totalorder %s137, 0
      %s140 = sadd.s32 %s139, 1
      %s141 = scalar_select %p138, %s139, %s140
      %p144 = pneg %p138
      %p145 = scmp.eq.s32.totalorder %s33, 1
      %p146 = por %p144, %p145
      %p147 = scmp.ne.s32.totalorder %s139, %s142
      %p148 = scmp.eq.s32.totalorder %s33, 0
      %p149 = por %p147, %p148
      %p150 = scmp.ne.s32.totalorder %s139, %s142
      %p151 = scmp.eq.s32.totalorder %s38, 1
      %p152 = por %p150, %p151
      %p153 = scmp.ne.s32.totalorder %s142, %s143
      %p154 = scmp.eq.s32.totalorder %s38, 0
      %p155 = por %p153, %p154
      %p156 = scmp.ne.s32.totalorder %s142, %s143
      %p157 = scmp.eq.s32.totalorder %s39, 1
      %p158 = por %p156, %p157
      %p160 = scmp.ne.s32.totalorder %s143, %s159
      %p161 = scmp.eq.s32.totalorder %s39, 0
      %p162 = por %p160, %p161
      %s163 = ssub.s32 %s40, %s52
      %s164 = ssub.s32 %s41, %s48
      %s165 = sor.u32 %s163, %s164
      %p166 = scmp.eq.s32.totalorder %s165, 0
      %s168 = sadd.s32 %s167, 1
      %s169 = scalar_select %p166, %s167, %s168
      %p172 = pneg %p166
      %p173 = scmp.eq.s32.totalorder %s33, 1
      %p174 = por %p172, %p173
      %p175 = scmp.ne.s32.totalorder %s167, %s170
      %p176 = scmp.eq.s32.totalorder %s33, 0
      %p177 = por %p175, %p176
      %p178 = scmp.ne.s32.totalorder %s167, %s170
      %p179 = scmp.eq.s32.totalorder %s38, 1
      %p180 = por %p178, %p179
      %p181 = scmp.ne.s32.totalorder %s170, %s171
      %p182 = scmp.eq.s32.totalorder %s38, 0
      %p183 = por %p181, %p182
      %p184 = scmp.ne.s32.totalorder %s170, %s171
      %p185 = scmp.eq.s32.totalorder %s39, 1
      %p186 = por %p184, %p185
      %p188 = scmp.ne.s32.totalorder %s171, %s187
      %p189 = scmp.eq.s32.totalorder %s39, 0
      %p190 = por %p188, %p189
      %s191 = ssub.s32 %s40, %s52
      %p192 = scmp.eq.s32.totalorder %s191, 0
      %s194 = sadd.s32 %s193, 1
      %s195 = scalar_select %p192, %s193, %s194
      %p198 = pneg %p192
      %p199 = scmp.eq.s32.totalorder %s33, 1
      %p200 = por %p198, %p199
      %p201 = scmp.ne.s32.totalorder %s193, %s196
      %p202 = scmp.eq.s32.totalorder %s33, 0
      %p203 = por %p201, %p202
      %p204 = scmp.ne.s32.totalorder %s193, %s196
      %p205 = scmp.eq.s32.totalorder %s38, 1
      %p206 = por %p204, %p205
      %p207 = scmp.ne.s32.totalorder %s196, %s197
      %p208 = scmp.eq.s32.totalorder %s38, 0
      %p209 = por %p207, %p208
      %p210 = scmp.ne.s32.totalorder %s196, %s197
      %p211 = scmp.eq.s32.totalorder %s39, 1
      %p212 = por %p210, %p211
      %p214 = scmp.ne.s32.totalorder %s197, %s213
      %p215 = scmp.eq.s32.totalorder %s39, 0
      %p216 = por %p214, %p215
      %s218 = sadd.s32 %s217, 1
      %p221 = scmp.eq.s32.totalorder %s33, 1
      %p222 = scmp.ne.s32.totalorder %s217, %s219
      %p223 = scmp.eq.s32.totalorder %s33, 0
      %p224 = por %p222, %p223
      %p225 = scmp.ne.s32.totalorder %s217, %s219
      %p226 = scmp.eq.s32.totalorder %s38, 1
      %p227 = por %p225, %p226
      %p228 = scmp.ne.s32.totalorder %s219, %s220
      %p229 = scmp.eq.s32.totalorder %s38, 0
      %p230 = por %p228, %p229
      %p231 = scmp.ne.s32.totalorder %s219, %s220
      %p232 = scmp.eq.s32.totalorder %s39, 1
      %p233 = por %p231, %p232
      %p235 = scmp.ne.s32.totalorder %s220, %s234
      %p236 = scmp.eq.s32.totalorder %s39, 0
      %p237 = por %p235, %p236
      %s239 = sadd.s32 %s238, 1
      %p242 = scmp.eq.s32.totalorder %s33, 1
      %p243 = scmp.ne.s32.totalorder %s238, %s240
      %p244 = scmp.eq.s32.totalorder %s33, 0
      %p245 = por %p243, %p244
      %p246 = scmp.ne.s32.totalorder %s238, %s240
      %p247 = scmp.eq.s32.totalorder %s38, 1
      %p248 = por %p246, %p247
      %p249 = scmp.ne.s32.totalorder %s240, %s241
      %p250 = scmp.eq.s32.totalorder %s38, 0
      %p251 = por %p249, %p250
      %p252 = scmp.ne.s32.totalorder %s240, %s241
      %p253 = scmp.eq.s32.totalorder %s39, 1
      %p254 = por %p252, %p253
      %p256 = scmp.ne.s32.totalorder %s241, %s255
      %p257 = scmp.eq.s32.totalorder %s39, 0
      %p258 = por %p256, %p257
      %s260 = sadd.s32 %s259, 1
      %p263 = scmp.eq.s32.totalorder %s33, 1
      %p264 = scmp.ne.s32.totalorder %s259, %s261
      %p265 = scmp.eq.s32.totalorder %s33, 0
      %p266 = por %p264, %p265
      %p267 = scmp.ne.s32.totalorder %s259, %s261
      %p268 = scmp.eq.s32.totalorder %s38, 1
      %p269 = por %p267, %p268
      %p270 = scmp.ne.s32.totalorder %s261, %s262
      %p271 = scmp.eq.s32.totalorder %s38, 0
      %p272 = por %p270, %p271
      %p273 = scmp.ne.s32.totalorder %s261, %s262
      %p274 = scmp.eq.s32.totalorder %s39, 1
      %p275 = por %p273, %p274
      %p277 = scmp.ne.s32.totalorder %s262, %s276
      %p278 = scmp.eq.s32.totalorder %s39, 0
      %p279 = por %p277, %p278
      %s281 = sadd.s32 %s280, 1
      %p284 = scmp.eq.s32.totalorder %s33, 1
      %p285 = scmp.ne.s32.totalorder %s280, %s282
      %p286 = scmp.eq.s32.totalorder %s33, 0
      %p287 = por %p285, %p286
      %p288 = scmp.ne.s32.totalorder %s280, %s282
      %p289 = scmp.eq.s32.totalorder %s38, 1
      %p290 = por %p288, %p289
      %p291 = scmp.ne.s32.totalorder %s282, %s283
      %p292 = scmp.eq.s32.totalorder %s38, 0
      %p293 = por %p291, %p292
      %p294 = scmp.ne.s32.totalorder %s282, %s283
      %p295 = scmp.eq.s32.totalorder %s39, 1
      %p296 = por %p294, %p295
      %p298 = scmp.ne.s32.totalorder %s283, %s297
      %p299 = scmp.eq.s32.totalorder %s39, 0
      %p300 = por %p298, %p299
      %s302 = sadd.s32 %s301, 1
      %p305 = scmp.eq.s32.totalorder %s33, 1
      %p306 = scmp.ne.s32.totalorder %s301, %s303
      %p307 = scmp.eq.s32.totalorder %s33, 0
      %p308 = por %p306, %p307
      %p309 = scmp.ne.s32.totalorder %s301, %s303
      %p310 = scmp.eq.s32.totalorder %s38, 1
      %p311 = por %p309, %p310
      %p312 = scmp.ne.s32.totalorder %s303, %s304
      %p313 = scmp.eq.s32.totalorder %s38, 0
      %p314 = por %p312, %p313
      %p315 = scmp.ne.s32.totalorder %s303, %s304
      %p316 = scmp.eq.s32.totalorder %s39, 1
      %p317 = por %p315, %p316
      %p319 = scmp.ne.s32.totalorder %s304, %s318
      %p320 = scmp.eq.s32.totalorder %s39, 0
      %p321 = por %p319, %p320
      %s323 = sadd.s32 %s322, 1
      %p326 = scmp.eq.s32.totalorder %s33, 1
      %p327 = scmp.ne.s32.totalorder %s322, %s324
      %p328 = scmp.eq.s32.totalorder %s33, 0
      %p329 = por %p327, %p328
      %p330 = scmp.ne.s32.totalorder %s322, %s324
      %p331 = scmp.eq.s32.totalorder %s38, 1
      %p332 = por %p330, %p331
      %p333 = scmp.ne.s32.totalorder %s324, %s325
      %p334 = scmp.eq.s32.totalorder %s38, 0
      %p335 = por %p333, %p334
      %p336 = scmp.ne.s32.totalorder %s324, %s325
      %p337 = scmp.eq.s32.totalorder %s39, 1
      %p338 = por %p336, %p337
      %p340 = scmp.ne.s32.totalorder %s325, %s339
      %p341 = scmp.eq.s32.totalorder %s39, 0
      %p342 = por %p340, %p341
      %s344 = sadd.s32 %s343, 1
      %p347 = scmp.eq.s32.totalorder %s33, 1
      %p348 = scmp.ne.s32.totalorder %s343, %s345
      %p349 = scmp.eq.s32.totalorder %s33, 0
      %p350 = por %p348, %p349
      %p351 = scmp.ne.s32.totalorder %s343, %s345
      %p352 = scmp.eq.s32.totalorder %s38, 1
      %p353 = por %p351, %p352
      %p354 = scmp.ne.s32.totalorder %s345, %s346
      %p355 = scmp.eq.s32.totalorder %s38, 0
      %p356 = por %p354, %p355
      %p357 = scmp.ne.s32.totalorder %s345, %s346
      %p358 = scmp.eq.s32.totalorder %s39, 1
      %p359 = por %p357, %p358
      %p361 = scmp.ne.s32.totalorder %s346, %s360
      %p362 = scmp.eq.s32.totalorder %s39, 0
      %p363 = por %p361, %p362
      %s365 = sadd.s32 %s364, 1
      %p368 = scmp.eq.s32.totalorder %s33, 1
      %p369 = scmp.ne.s32.totalorder %s364, %s366
      %p370 = scmp.eq.s32.totalorder %s33, 0
      %p371 = por %p369, %p370
      %p372 = scmp.ne.s32.totalorder %s364, %s366
      %p373 = scmp.eq.s32.totalorder %s38, 1
      %p374 = por %p372, %p373
      %p375 = scmp.ne.s32.totalorder %s366, %s367
      %p376 = scmp.eq.s32.totalorder %s38, 0
      %p377 = por %p375, %p376
      %p378 = scmp.ne.s32.totalorder %s366, %s367
      %p379 = scmp.eq.s32.totalorder %s39, 1
      %p380 = por %p378, %p379
      %p382 = scmp.ne.s32.totalorder %s367, %s381
      %p383 = scmp.eq.s32.totalorder %s39, 0
      %p384 = por %p382, %p383
      %s386 = sadd.s32 %s385, 1
      %p389 = scmp.eq.s32.totalorder %s33, 1
      %p390 = scmp.ne.s32.totalorder %s385, %s387
      %p391 = scmp.eq.s32.totalorder %s33, 0
      %p392 = por %p390, %p391
      %p393 = scmp.ne.s32.totalorder %s385, %s387
      %p394 = scmp.eq.s32.totalorder %s38, 1
      %p395 = por %p393, %p394
      %p396 = scmp.ne.s32.totalorder %s387, %s388
      %p397 = scmp.eq.s32.totalorder %s38, 0
      %p398 = por %p396, %p397
      %p399 = scmp.ne.s32.totalorder %s387, %s388
      %p400 = scmp.eq.s32.totalorder %s39, 1
      %p401 = por %p399, %p400
      %p403 = scmp.ne.s32.totalorder %s388, %s402
      %p404 = scmp.eq.s32.totalorder %s39, 0
      %p405 = por %p403, %p404
      %s407 = sadd.s32 %s406, 1
      %p410 = scmp.eq.s32.totalorder %s33, 1
      %p411 = scmp.ne.s32.totalorder %s406, %s408
      %p412 = scmp.eq.s32.totalorder %s33, 0
      %p413 = por %p411, %p412
      %p414 = scmp.ne.s32.totalorder %s406, %s408
      %p415 = scmp.eq.s32.totalorder %s38, 1
      %p416 = por %p414, %p415
      %p417 = scmp.ne.s32.totalorder %s408, %s409
      %p418 = scmp.eq.s32.totalorder %s38, 0
      %p419 = por %p417, %p418
      %p420 = scmp.ne.s32.totalorder %s408, %s409
      %p421 = scmp.eq.s32.totalorder %s39, 1
      %p422 = por %p420, %p421
      %p424 = scmp.ne.s32.totalorder %s409, %s423
      %p425 = scmp.eq.s32.totalorder %s39, 0
      %p426 = por %p424, %p425
      %s427 = ssub.s32 %s40, %s52
      %s428 = ssub.s32 %s41, %s48
      %s429 = sor.u32 %s427, %s428
      %p430 = scmp.eq.s32.totalorder %s429, 0
      %s432 = sadd.s32 %s431, 1
      %s433 = scalar_select %p430, %s431, %s432
      %p436 = pneg %p430
      %p437 = scmp.eq.s32.totalorder %s33, 1
      %p438 = por %p436, %p437
      %p439 = scmp.ne.s32.totalorder %s431, %s434
      %p440 = scmp.eq.s32.totalorder %s33, 0
      %p441 = por %p439, %p440
      %p442 = scmp.ne.s32.totalorder %s431, %s434
      %p443 = scmp.eq.s32.totalorder %s38, 1
      %p444 = por %p442, %p443
      %p445 = scmp.ne.s32.totalorder %s434, %s435
      %p446 = scmp.eq.s32.totalorder %s38, 0
      %p447 = por %p445, %p446
      %p448 = scmp.ne.s32.totalorder %s434, %s435
      %p449 = scmp.eq.s32.totalorder %s39, 1
      %p450 = por %p448, %p449
      %p452 = scmp.ne.s32.totalorder %s435, %s451
      %p453 = scmp.eq.s32.totalorder %s39, 0
      %p454 = por %p452, %p453
      %p455 = scmp.le.s32.totalorder 1, %s33
      %p456 = scmp.lt.s32.totalorder %s33, 3
      %p457 = pnand %p455, %p456
      %p458 = pneg %p457
      // Predicated region
      $region9: #{tpu_custom_call.1} parent=5 // pred_check
        _
      $region10: #{tpu_custom_call.1} parent=5 // pred_check_branch
        %460 = sbr.rel (%p457) target = $region12
      $region11: #{tpu_custom_call.1} parent=5 // pred_region
        %s461 = ssub.s32 %s33, 1
        // Predicated region
        $region13: #{tpu_custom_call.1} parent=11 // pred_check
          %p462 = pneg %p230
        $region14: #{tpu_custom_call.1} parent=11 // pred_check_branch
          %464 = sbr.rel (%p462) target = $region16
        $region15: #{tpu_custom_call.1} parent=11 // pred_region
          %s466 = ssub.s32 1024, 1024
          %467 = vsyncadd [#allocation9], %s466
          %s468 = sshll.u32 [#allocation8], 4
          %s469 = int_to_ptr.vmem [resolvable:$true] %s468
          %474 = dma.hbm_to_vmem [thread:$0]  %s6, 1024, %s469, [#allocation9], 64, 64, 4
        $region16: #{tpu_custom_call.1} parent=11 // pred_fallthru
          _
        // Predicated region
        $region17: #{tpu_custom_call.1} parent=11 // pred_check
          %p475 = pneg %p251
        $region18: #{tpu_custom_call.1} parent=11 // pred_check_branch
          %477 = sbr.rel (%p475) target = $region20
        $region19: #{tpu_custom_call.1} parent=11 // pred_region
          _
        $region20: #{tpu_custom_call.1} parent=11 // pred_fallthru
          _
        // Predicated region
        $region21: #{tpu_custom_call.1} parent=11 // pred_check
          %p478 = pneg %p272
        $region22: #{tpu_custom_call.1} parent=11 // pred_check_branch
          %480 = sbr.rel (%p478) target = $region24
        $region23: #{tpu_custom_call.1} parent=11 // pred_region
          _
        $region24: #{tpu_custom_call.1} parent=11 // pred_fallthru
          _
        // Predicated region
        $region25: #{tpu_custom_call.1} parent=11 // pred_check
          %p481 = pneg %p293
        $region26: #{tpu_custom_call.1} parent=11 // pred_check_branch
          %483 = sbr.rel (%p481) target = $region28
        $region27: #{tpu_custom_call.1} parent=11 // pred_region
          %s485 = ssub.s32 16, 16
          %486 = vsyncadd [#allocation9], %s485
          %s488 = sshll.u32 [#allocation10], 4
          %s489 = int_to_ptr.vmem [resolvable:$true] %s488
          %491 = dma.hbm_to_vmem [thread:$0]  %s9, 16, %s489, [#allocation9]
        $region28: #{tpu_custom_call.1} parent=11 // pred_fallthru
          _
        // Predicated region
        $region29: #{tpu_custom_call.1} parent=11 // pred_check
          %p492 = pneg %p314
        $region30: #{tpu_custom_call.1} parent=11 // pred_check_branch
          %494 = sbr.rel (%p492) target = $region32
        $region31: #{tpu_custom_call.1} parent=11 // pred_region
          _
        $region32: #{tpu_custom_call.1} parent=11 // pred_fallthru
          _
        // Predicated region
        $region33: #{tpu_custom_call.1} parent=11 // pred_check
          %p495 = pneg %p335
        $region34: #{tpu_custom_call.1} parent=11 // pred_check_branch
          %497 = sbr.rel (%p495) target = $region36
        $region35: #{tpu_custom_call.1} parent=11 // pred_region
          _
        $region36: #{tpu_custom_call.1} parent=11 // pred_fallthru
          _
        // Predicated region
        $region37: #{tpu_custom_call.1} parent=11 // pred_check
          %p498 = pneg %p356
        $region38: #{tpu_custom_call.1} parent=11 // pred_check_branch
          %500 = sbr.rel (%p498) target = $region40
        $region39: #{tpu_custom_call.1} parent=11 // pred_region
          _
        $region40: #{tpu_custom_call.1} parent=11 // pred_fallthru
          _
        // Predicated region
        $region41: #{tpu_custom_call.1} parent=11 // pred_check
          %p501 = pneg %p377
        $region42: #{tpu_custom_call.1} parent=11 // pred_check_branch
          %503 = sbr.rel (%p501) target = $region44
        $region43: #{tpu_custom_call.1} parent=11 // pred_region
          _
        $region44: #{tpu_custom_call.1} parent=11 // pred_fallthru
          _
        // Predicated region
        $region45: #{tpu_custom_call.1} parent=11 // pred_check
          %p504 = pneg %p398
        $region46: #{tpu_custom_call.1} parent=11 // pred_check_branch
          %506 = sbr.rel (%p504) target = $region48
        $region47: #{tpu_custom_call.1} parent=11 // pred_region
          %s508 = ssub.s32 1024, 1024
          %509 = vsyncadd [#allocation12], %s508
          %s510 = sshll.u32 [#allocation11], 4
          %s511 = int_to_ptr.vmem [resolvable:$true] %s510
          %516 = dma.hbm_to_vmem [thread:$0]  %s14, 1024, %s511, [#allocation12], 64, 64, 4
        $region48: #{tpu_custom_call.1} parent=11 // pred_fallthru
          _
        // Predicated region
        $region49: #{tpu_custom_call.1} parent=11 // pred_check
          %p517 = pneg %p419
        $region50: #{tpu_custom_call.1} parent=11 // pred_check_branch
          %519 = sbr.rel (%p517) target = $region52
        $region51: #{tpu_custom_call.1} parent=11 // pred_region
          _
        $region52: #{tpu_custom_call.1} parent=11 // pred_fallthru
          _
      $region12: #{tpu_custom_call.1} parent=5 // pred_fallthru
        _
      %p520 = scmp.lt.s32.totalorder %s33, 2
      // Predicated region
      $region53: #{tpu_custom_call.1} parent=5 // pred_check
        %p521 = pneg %p520
      $region54: #{tpu_custom_call.1} parent=5 // pred_check_branch
        %523 = sbr.rel (%p521) target = $region56
      $region55: #{tpu_custom_call.1} parent=5 // pred_region
        // Predicated region
        $region57: #{tpu_custom_call.1} parent=55 // pred_check
          %p524 = pneg %p65
        $region58: #{tpu_custom_call.1} parent=55 // pred_check_branch
          %526 = sbr.rel (%p524) target = $region60
        $region59: #{tpu_custom_call.1} parent=55 // pred_region
          %p527 = scmp.lt.s32.totalorder %s40, 1
          %s528 = scalar_select %p527, %s40, 1
          %s529 = scalar_lea.vmem %s0, %s528
        $region60: #{tpu_custom_call.1} parent=55 // pred_fallthru
          _
        // Predicated region
        $region61: #{tpu_custom_call.1} parent=55 // pred_check
          %p530 = pneg %p93
        $region62: #{tpu_custom_call.1} parent=55 // pred_check_branch
          %532 = sbr.rel (%p530) target = $region64
        $region63: #{tpu_custom_call.1} parent=55 // pred_region
          %s533 = sand.u32 %s83, 1
          %s534 = scalar_lea.sflag [#allocation3], %s533
          %s535 = sand.u32 %s83, 1
          %s536 = smul.addr %s535, 16
          %s537 = scalar_lea.vmem [#allocation2], %s536
          %s538 = smul.u32 2, %s41
          %s540 = ssub.s32 256, 256
          %541 = vsyncadd %s534, %s540
          %s542 = smul.addr %s40, 2
          %s543 = sadd.s32 %s538, %s542
          %s544 = smul.addr %s543, 128
          %s545 = scalar_lea.hbm %s1, %s544
          %s546 = sshll.u32 %s537, 4
          %s547 = int_to_ptr.vmem [resolvable:$true] %s546
          %552 = dma.hbm_to_vmem [thread:$0]  %s545, 256, %s547, %s534, 128, 128, 8
        $region64: #{tpu_custom_call.1} parent=55 // pred_fallthru
          _
        // Predicated region
        $region65: #{tpu_custom_call.1} parent=55 // pred_check
          %p553 = pneg %p121
        $region66: #{tpu_custom_call.1} parent=55 // pred_check_branch
          %555 = sbr.rel (%p553) target = $region68
        $region67: #{tpu_custom_call.1} parent=55 // pred_region
          %s556 = sand.u32 %s33, 1
          %s557 = scalar_lea.sflag [#allocation6], %s556
          %s558 = sand.u32 %s111, 1
          %s559 = smul.addr %s558, 16
          %s560 = scalar_lea.vmem [#allocation5], %s559
          %s561 = smul.u32 2, %s41
          %s563 = ssub.s32 256, 256
          %564 = vsyncadd %s557, %s563
          %s565 = smul.addr %s40, 2
          %s566 = sadd.s32 %s561, %s565
          %s567 = smul.addr %s566, 128
          %s568 = scalar_lea.hbm %s2, %s567
          %s569 = sshll.u32 %s560, 4
          %s570 = int_to_ptr.vmem [resolvable:$true] %s569
          %575 = dma.hbm_to_vmem [thread:$0]  %s568, 256, %s570, %s557, 128, 128, 8
        $region68: #{tpu_custom_call.1} parent=55 // pred_fallthru
          _
        // Predicated region
        $region69: #{tpu_custom_call.1} parent=55 // pred_check
          %p576 = pneg %p149
        $region70: #{tpu_custom_call.1} parent=55 // pred_check_branch
          %578 = sbr.rel (%p576) target = $region72
        $region71: #{tpu_custom_call.1} parent=55 // pred_region
          %s579 = sand.u32 %s33, 1
          %s580 = scalar_lea.sflag [#allocation6], %s579
          %s581 = sand.u32 %s139, 1
          %s582 = smul.addr %s581, 16
          %s583 = scalar_lea.vmem [#allocation7], %s582
          %s584 = smul.u32 2, %s41
          %s586 = ssub.s32 256, 256
          %587 = vsyncadd %s580, %s586
          %s588 = smul.addr %s40, 2
          %s589 = sadd.s32 %s584, %s588
          %s590 = smul.addr %s589, 128
          %s591 = scalar_lea.hbm %s3, %s590
          %s592 = sshll.u32 %s583, 4
          %s593 = int_to_ptr.vmem [resolvable:$true] %s592
          %598 = dma.hbm_to_vmem [thread:$0]  %s591, 256, %s593, %s580, 128, 128, 8
        $region72: #{tpu_custom_call.1} parent=55 // pred_fallthru
          _
        // Predicated region
        $region73: #{tpu_custom_call.1} parent=55 // pred_check
          %p599 = pneg %p177
        $region74: #{tpu_custom_call.1} parent=55 // pred_check_branch
          %601 = sbr.rel (%p599) target = $region76
        $region75: #{tpu_custom_call.1} parent=55 // pred_region
          %s602 = smul.u32 2, %s41
          %p603 = scmp.lt.s32.totalorder %s40, 1
          %s604 = scalar_select %p603, %s40, 1
          %p605 = scmp.lt.s32.totalorder %s602, 1
          %s606 = scalar_select %p605, %s602, 1
          %s607 = smul.addr %s604, 2
          %s608 = sadd.s32 %s606, %s607
          %s609 = smul.addr %s608, 8
          %s610 = scalar_lea.vmem %s4, %s609
          %s611 = smul.u32 2, %s41
        $region76: #{tpu_custom_call.1} parent=55 // pred_fallthru
          _
        // Predicated region
        $region77: #{tpu_custom_call.1} parent=55 // pred_check
          %p612 = pneg %p203
        $region78: #{tpu_custom_call.1} parent=55 // pred_check_branch
          %614 = sbr.rel (%p612) target = $region80
        $region79: #{tpu_custom_call.1} parent=55 // pred_region
          %p615 = scmp.lt.s32.totalorder %s40, 1
          %s616 = scalar_select %p615, %s40, 1
          %s617 = scalar_lea.vmem %s5, %s616
        $region80: #{tpu_custom_call.1} parent=55 // pred_fallthru
          _
      $region56: #{tpu_custom_call.1} parent=5 // pred_fallthru
        _
      %p618 = scmp.le.s32.totalorder 1, %s33
      %p619 = scmp.lt.s32.totalorder %s33, 3
      %p620 = pnand %p618, %p619
      %p621 = pneg %p620
      // Predicated region
      $region81: #{tpu_custom_call.1} parent=5 // pred_check
        _
      $region82: #{tpu_custom_call.1} parent=5 // pred_check_branch
        %623 = sbr.rel (%p620) target = $region84
      $region83: #{tpu_custom_call.1} parent=5 // pred_region
        %s624 = ssub.s32 %s33, 1
        %s625 = sand.u32 %s86, 1
        %s626 = scalar_lea.sflag [#allocation3], %s625
        %s627 = sand.u32 %s86, 1
        %s628 = smul.addr %s627, 16
        %s629 = scalar_lea.vmem [#allocation2], %s628
        // Predicated region
        $region85: #{tpu_custom_call.1} parent=83 // pred_check
          %p630 = pneg %p99
        $region86: #{tpu_custom_call.1} parent=83 // pred_check_branch
          %632 = sbr.rel (%p630) target = $region88
        $region87: #{tpu_custom_call.1} parent=83 // pred_region
          %633 = dma.done %s626, 256
        $region88: #{tpu_custom_call.1} parent=83 // pred_fallthru
          _
        %s634 = sand.u32 %s38, 1
        %s635 = scalar_lea.sflag [#allocation6], %s634
        %s636 = sand.u32 %s114, 1
        %s637 = smul.addr %s636, 16
        %s638 = scalar_lea.vmem [#allocation5], %s637
        // Predicated region
        $region89: #{tpu_custom_call.1} parent=83 // pred_check
          %p639 = pneg %p127
        $region90: #{tpu_custom_call.1} parent=83 // pred_check_branch
          %641 = sbr.rel (%p639) target = $region92
        $region91: #{tpu_custom_call.1} parent=83 // pred_region
          %642 = dma.done %s635, 256
        $region92: #{tpu_custom_call.1} parent=83 // pred_fallthru
          _
        %s643 = sand.u32 %s38, 1
        %s644 = scalar_lea.sflag [#allocation6], %s643
        %s645 = sand.u32 %s142, 1
        %s646 = smul.addr %s645, 16
        %s647 = scalar_lea.vmem [#allocation7], %s646
        // Predicated region
        $region93: #{tpu_custom_call.1} parent=83 // pred_check
          %p648 = pneg %p155
        $region94: #{tpu_custom_call.1} parent=83 // pred_check_branch
          %650 = sbr.rel (%p648) target = $region96
        $region95: #{tpu_custom_call.1} parent=83 // pred_region
          %651 = dma.done %s644, 256
        $region96: #{tpu_custom_call.1} parent=83 // pred_fallthru
          _
        // Predicated region
        $region97: #{tpu_custom_call.1} parent=83 // pred_check
          %p652 = pneg %p230
        $region98: #{tpu_custom_call.1} parent=83 // pred_check_branch
          %654 = sbr.rel (%p652) target = $region100
        $region99: #{tpu_custom_call.1} parent=83 // pred_region
          %655 = dma.done [#allocation9], 1024
        $region100: #{tpu_custom_call.1} parent=83 // pred_fallthru
          _
        // Predicated region
        $region101: #{tpu_custom_call.1} parent=83 // pred_check
          %p656 = pneg %p293
        $region102: #{tpu_custom_call.1} parent=83 // pred_check_branch
          %658 = sbr.rel (%p656) target = $region104
        $region103: #{tpu_custom_call.1} parent=83 // pred_region
          %659 = dma.done [#allocation9], 16
        $region104: #{tpu_custom_call.1} parent=83 // pred_fallthru
          _
        // Predicated region
        $region105: #{tpu_custom_call.1} parent=83 // pred_check
          %p660 = pneg %p398
        $region106: #{tpu_custom_call.1} parent=83 // pred_check_branch
          %662 = sbr.rel (%p660) target = $region108
        $region107: #{tpu_custom_call.1} parent=83 // pred_region
          %663 = dma.done [#allocation12], 1024
        $region108: #{tpu_custom_call.1} parent=83 // pred_fallthru
          _
        %p664 = scmp.lt.s32.totalorder %s42, 1
        %s665 = scalar_select %p664, %s42, 1
        %s666 = scalar_lea.vmem %s0, %s665
        %p667 = pneg %p71
        %p668 = pneg %p68
        %s669 = sand.u32 %s86, 1
        %s670 = scalar_lea.sflag [#allocation3], %s669
        %s671 = sand.u32 %s86, 1
        %s672 = smul.addr %s671, 16
        %s673 = scalar_lea.vmem [#allocation2], %s672
        %p674 = pneg %p99
        %p675 = pneg %p96
        %s676 = sand.u32 %s38, 1
        %s677 = scalar_lea.sflag [#allocation6], %s676
        %s678 = sand.u32 %s114, 1
        %s679 = smul.addr %s678, 16
        %s680 = scalar_lea.vmem [#allocation5], %s679
        %p681 = pneg %p127
        %p682 = pneg %p124
        %s683 = sand.u32 %s38, 1
        %s684 = scalar_lea.sflag [#allocation6], %s683
        %s685 = sand.u32 %s142, 1
        %s686 = smul.addr %s685, 16
        %s687 = scalar_lea.vmem [#allocation7], %s686
        %p688 = pneg %p155
        %p689 = pneg %p152
        %s690 = smul.u32 2, %s43
        %p691 = scmp.lt.s32.totalorder %s42, 1
        %s692 = scalar_select %p691, %s42, 1
        %p693 = scmp.lt.s32.totalorder %s690, 1
        %s694 = scalar_select %p693, %s690, 1
        %s695 = smul.addr %s692, 2
        %s696 = sadd.s32 %s694, %s695
        %s697 = smul.addr %s696, 8
        %s698 = scalar_lea.vmem %s4, %s697
        %p699 = pneg %p183
        %p700 = pneg %p180
        %p701 = scmp.lt.s32.totalorder %s42, 1
        %s702 = scalar_select %p701, %s42, 1
        %s703 = scalar_lea.vmem %s5, %s702
        %p704 = pneg %p209
        %p705 = pneg %p206
        %p706 = pneg %p230
        %p707 = pneg %p227
        %p708 = pneg %p251
        %p709 = pneg %p248
        %p710 = pneg %p272
        %p711 = pneg %p269
        %p712 = pneg %p293
        %p713 = pneg %p290
        %p714 = pneg %p314
        %p715 = pneg %p311
        %p716 = pneg %p335
        %p717 = pneg %p332
        %p718 = pneg %p356
        %p719 = pneg %p353
        %p720 = pneg %p377
        %p721 = pneg %p374
        %p722 = pneg %p398
        %p723 = pneg %p395
        %p724 = pneg %p419
        %p725 = pneg %p416
        %p726 = pneg %p447
        %p727 = pneg %p444
        %s728 = sand.u32 %s434, 1
        %s729 = scalar_lea.sflag [#allocation4], %s728
        %s730 = sand.u32 %s434, 1
        %s731 = smul.addr %s730, 16
        %s732 = scalar_lea.vmem [#allocation13], %s731
        %p733 = scmp.lt.s32.totalorder %s42, 1
        %s734 = scalar_select %p733, %s42, 1
        %s735 = scalar_lea.vmem %s0, %s734
        %s736 = smul.u32 2, %s43
        %s737 = smul.u32 2, %s43
        %s738 = smul.u32 2, %s43
        %s739 = smul.u32 2, %s43
        %p740 = scmp.lt.s32.totalorder %s42, 1
        %s741 = scalar_select %p740, %s42, 1
        %p742 = scmp.lt.s32.totalorder %s739, 1
        %s743 = scalar_select %p742, %s739, 1
        %s744 = smul.addr %s741, 2
        %s745 = sadd.s32 %s743, %s744
        %s746 = smul.addr %s745, 8
        %s747 = scalar_lea.vmem %s4, %s746
        %s748 = smul.u32 2, %s43
        %p749 = scmp.lt.s32.totalorder %s42, 1
        %s750 = scalar_select %p749, %s42, 1
        %s751 = scalar_lea.vmem %s5, %s750
        %s752 = smul.u32 2, %s43
        %v754 = vld [vmem:[%s735] sm:$0x1]
        %v755 = vld [vmem:[%s629] sm:$0xff]
        %v756 = vld [vmem:[%s629 + $0x8] sm:$0xff]
        %v758 = vlaneseq
        %v759 = vshrl.u32 %v758, 7
        %v760 = vsub.s32 0, %v759
        %v761 = vrot.slane %v754, %v760
        %762 = vset.pattern.permute.xlu0 0
        %763 = vperm.xlu0 %762, %v761
        %v764 = vpop.permute.xlu0 %763
        %v766 = vmul.f32 %v764, %v755
        %v767 = vmul.f32 %v764, %v756
        %v768 = vsub.f32 1.0, %v754
        %v769 = vld [vmem:[%s638] sm:$0xff]
        %v770 = vld [vmem:[%s638 + $0x8] sm:$0xff]
        %v772 = vlaneseq
        %v773 = vshrl.u32 %v772, 7
        %v774 = vsub.s32 0, %v773
        %v775 = vrot.slane %v768, %v774
        %776 = vset.pattern.permute.xlu0 0
        %777 = vperm.xlu0 %776, %v775
        %v778 = vpop.permute.xlu0 %777
        %v780 = vmul.f32 %v778, %v769
        %v781 = vmul.f32 %v778, %v770
        %v782 = vadd.f32 %v766, %v780
        %v783 = vadd.f32 %v767, %v781
        %v784 = vpack.c.bf16 %v783, %v782
        %v785 = vld [vmem:[#allocation8] sm:$0xf]
        %v786 = vld [vmem:[#allocation8 + $0x4] sm:$0xf]
        %v787 = vld [vmem:[#allocation8 + $0x8] sm:$0xf]
        %v788 = vld [vmem:[#allocation8 + $0xc] sm:$0xf]
        %v789 = vld [vmem:[#allocation8 + $0x10] sm:$0xf]
        %v790 = vld [vmem:[#allocation8 + $0x14] sm:$0xf]
        %v791 = vld [vmem:[#allocation8 + $0x18] sm:$0xf]
        %v792 = vld [vmem:[#allocation8 + $0x1c] sm:$0xf]
        %v793 = vld [vmem:[#allocation8 + $0x20] sm:$0xf]
        %v794 = vld [vmem:[#allocation8 + $0x24] sm:$0xf]
        %v795 = vld [vmem:[#allocation8 + $0x28] sm:$0xf]
        %v796 = vld [vmem:[#allocation8 + $0x2c] sm:$0xf]
        %v797 = vld [vmem:[#allocation8 + $0x30] sm:$0xf]
        %v798 = vld [vmem:[#allocation8 + $0x34] sm:$0xf]
        %v799 = vld [vmem:[#allocation8 + $0x38] sm:$0xf]
        %v800 = vld [vmem:[#allocation8 + $0x3c] sm:$0xf]
        %v801 = vld [vmem:[%s7] sm:$0x1]
        %v803 = vlaneseq
        %v804 = vshrl.u32 %v803, 7
        %v805 = vsub.s32 0, %v804
        %v806 = vrot.slane %v801, %v805
        %v824 = vunpack.c.l.b16 %v785
        %v825 = vunpack.c.l.b16 %v786
        %v826 = vunpack.c.l.b16 %v787
        %v827 = vunpack.c.l.b16 %v788
        %v828 = vunpack.c.l.b16 %v789
        %v829 = vunpack.c.l.b16 %v790
        %v830 = vunpack.c.l.b16 %v791
        %v831 = vunpack.c.l.b16 %v792
        %v832 = vunpack.c.l.b16 %v793
        %v833 = vunpack.c.l.b16 %v794
        %v834 = vunpack.c.l.b16 %v795
        %v835 = vunpack.c.l.b16 %v796
        %v836 = vunpack.c.l.b16 %v797
        %v837 = vunpack.c.l.b16 %v798
        %v838 = vunpack.c.l.b16 %v799
        %v839 = vunpack.c.l.b16 %v800
        %v840 = vpack.c.b16 %v825, %v824
        %v841 = vpack.c.b16 %v827, %v826
        %v842 = vpack.c.b16 %v829, %v828
        %v843 = vpack.c.b16 %v831, %v830
        %v844 = vpack.c.b16 %v833, %v832
        %v845 = vpack.c.b16 %v835, %v834
        %v846 = vpack.c.b16 %v837, %v836
        %v847 = vpack.c.b16 %v839, %v838
        %856 = vmatprep.subr.bf16.mxu0 0
        %857 = vmatpush1.bf16.msra.mxu0 %v840
        %858 = vmatprep.subr.bf16.mxu0 0
        %859 = vmatpush1.bf16.msra.mxu0 %v841
        %860 = vmatprep.subr.bf16.mxu0 0
        %861 = vmatpush1.bf16.msra.mxu0 %v842
        %862 = vmatprep.subr.bf16.mxu0 0
        %863 = vmatpush1.bf16.msra.mxu0 %v843
        %864 = vmatprep.subr.bf16.mxu0 0
        %865 = vmatpush1.bf16.msra.mxu0 %v844
        %866 = vmatprep.subr.bf16.mxu0 0
        %867 = vmatpush1.bf16.msra.mxu0 %v845
        %868 = vmatprep.subr.bf16.mxu0 0
        %869 = vmatpush1.bf16.msra.mxu0 %v846
        %870 = vmatprep.subr.bf16.mxu0 0
        %871 = vmatpush1.bf16.msra.mxu0 %v847
        %872 = vmatprep.subr.bf16.mxu0 0
        %873 = vmatpush1.bf16.msra.mxu0 0
        %874 = vmatprep.subr.bf16.mxu0 0
        %875 = vmatpush1.bf16.msra.mxu0 0
        %876 = vmatprep.subr.bf16.mxu0 0
        %877 = vmatpush1.bf16.msra.mxu0 0
        %878 = vmatprep.subr.bf16.mxu0 0
        %879 = vmatpush1.bf16.msra.mxu0 0
        %880 = vmatprep.subr.bf16.mxu0 0
        %881 = vmatpush1.bf16.msra.mxu0 0
        %882 = vmatprep.subr.bf16.mxu0 0
        %883 = vmatpush1.bf16.msra.mxu0 0
        %884 = vmatprep.subr.bf16.mxu0 0
        %885 = vmatpush1.bf16.msra.mxu0 0
        %886 = vmatprep.subr.bf16.mxu0 0
        %887 = vmatpush1.bf16.msra.mxu0 0
        %888 = vmatprep.mubr.bf16.mxu0 0
        %889 = vmatmul.mubr.bf16.gmra.mrb[0].mxu0 %v784
        %v890 = vpop.f32.mrb[0].mxu0
        %v891 = vadd.f32 %v806, %v890
        %v892 = vpop.f32.mrb[0].mxu0
        %v893 = vpop.f32.mrb[0].mxu0
        %v894 = vadd.f32 %v806, %v893
        %v895 = vpop.f32.mrb[0].mxu0
        %896 = vdwg.mxu0
        %v897 = vmul.f32 %v891, 0.5
        %v898 = vmul.f32 %v894, 0.5
        %v899 = vmul.f32 %v891, 0.044715
        %v900 = vmul.f32 %v894, 0.044715
        %v901 = vmul.f32 %v899, %v891
        %v902 = vmul.f32 %v900, %v894
        %v903 = vmul.f32 %v901, %v891
        %v904 = vmul.f32 %v902, %v894
        %v905 = vadd.f32 %v891, %v903
        %v906 = vadd.f32 %v894, %v904
        %v907 = vmul.f32 %v905, 0.7978846
        %v908 = vmul.f32 %v906, 0.7978846
        %v909 = vtanh.pop %v907
        %v910 = vtanh.pop %v908
        %v911 = vadd.f32 %v909, 1.0
        %v912 = vadd.f32 %v910, 1.0
        %v913 = vmul.f32 %v897, %v911
        %v914 = vmul.f32 %v898, %v912
        %v915 = vld [vmem:[%s647] sm:$0xff]
        %v916 = vld [vmem:[%s647 + $0x8] sm:$0xff]
        %v917 = vpack.c.bf16 %v916, %v915
        %v918 = vld [vmem:[%s8] sm:$0xf]
        %v919 = vld [vmem:[%s8 + $0x4] sm:$0xf]
        %v920 = vld [vmem:[#allocation10] sm:$0x1]
        %v922 = vlaneseq
        %v923 = vshrl.u32 %v922, 7
        %v924 = vsub.s32 0, %v923
        %v925 = vrot.slane %v920, %v924
        %v929 = vunpack.c.l.b16 %v918
        %v930 = vunpack.c.l.b16 %v919
        %v931 = vpack.c.b16 %v930, %v929
        %vm933 = vcmask 130048
        %v935 = vsel %vm933, %v917, 0
        %937 = vmatprep.subr.bf16.mxu0 0
        %938 = vmatpush1.bf16.msra.mxu0 %v931
        %939 = vmatprep.subr.bf16.mxu0 0
        %940 = vmatpush1.bf16.msra.mxu0 0
        %941 = vmatprep.subr.bf16.mxu0 0
        %942 = vmatpush1.bf16.msra.mxu0 0
        %943 = vmatprep.subr.bf16.mxu0 0
        %944 = vmatpush1.bf16.msra.mxu0 0
        %945 = vmatprep.subr.bf16.mxu0 0
        %946 = vmatpush1.bf16.msra.mxu0 0
        %947 = vmatprep.subr.bf16.mxu0 0
        %948 = vmatpush1.bf16.msra.mxu0 0
        %949 = vmatprep.subr.bf16.mxu0 0
        %950 = vmatpush1.bf16.msra.mxu0 0
        %951 = vmatprep.subr.bf16.mxu0 0
        %952 = vmatpush1.bf16.msra.mxu0 0
        %953 = vmatprep.subr.bf16.mxu0 0
        %954 = vmatpush1.bf16.msra.mxu0 0
        %955 = vmatprep.subr.bf16.mxu0 0
        %956 = vmatpush1.bf16.msra.mxu0 0
        %957 = vmatprep.subr.bf16.mxu0 0
        %958 = vmatpush1.bf16.msra.mxu0 0
        %959 = vmatprep.subr.bf16.mxu0 0
        %960 = vmatpush1.bf16.msra.mxu0 0
        %961 = vmatprep.subr.bf16.mxu0 0
        %962 = vmatpush1.bf16.msra.mxu0 0
        %963 = vmatprep.subr.bf16.mxu0 0
        %964 = vmatpush1.bf16.msra.mxu0 0
        %965 = vmatprep.subr.bf16.mxu0 0
        %966 = vmatpush1.bf16.msra.mxu0 0
        %967 = vmatprep.subr.bf16.mxu0 0
        %968 = vmatpush1.bf16.msra.mxu0 0
        %969 = vmatprep.mubr.bf16.mxu0 0
        %970 = vmatmul.mubr.bf16.gmra.mrb[0].mxu0 %v935
        %v971 = vpop.f32.mrb[0].mxu0
        %v972 = vadd.f32 %v925, %v971
        %v973 = vpop.f32.mrb[0].mxu0
        %v974 = vpop.f32.mrb[0].mxu0
        %v975 = vadd.f32 %v925, %v974
        %v976 = vpop.f32.mrb[0].mxu0
        %977 = vdwg.mxu0
        %v978 = vmul.f32 %v972, 0.5
        %v979 = vmul.f32 %v975, 0.5
        %v980 = vmul.f32 %v972, 0.044715
        %v981 = vmul.f32 %v975, 0.044715
        %v982 = vmul.f32 %v980, %v972
        %v983 = vmul.f32 %v981, %v975
        %v984 = vmul.f32 %v982, %v972
        %v985 = vmul.f32 %v983, %v975
        %v986 = vadd.f32 %v972, %v984
        %v987 = vadd.f32 %v975, %v985
        %v988 = vmul.f32 %v986, 0.7978846
        %v989 = vmul.f32 %v987, 0.7978846
        %v990 = vtanh.pop %v988
        %v991 = vtanh.pop %v989
        %v992 = vadd.f32 %v990, 1.0
        %v993 = vadd.f32 %v991, 1.0
        %v994 = vmul.f32 %v978, %v992
        %v995 = vmul.f32 %v979, %v993
        %v996 = vpack.c.bf16 %v995, %v994
        %v997 = vld [vmem:[%s10] sm:$0xf]
        %v998 = vld [vmem:[%s10 + $0x4] sm:$0xf]
        %v999 = vld [vmem:[%s10 + $0x8] sm:$0xf]
        %v1000 = vld [vmem:[%s10 + $0xc] sm:$0xf]
        %v1001 = vld [vmem:[%s10 + $0x10] sm:$0xf]
        %v1002 = vld [vmem:[%s10 + $0x14] sm:$0xf]
        %v1003 = vld [vmem:[%s10 + $0x18] sm:$0xf]
        %v1004 = vld [vmem:[%s10 + $0x1c] sm:$0xf]
        %v1005 = vld [vmem:[%s10 + $0x20] sm:$0xf]
        %v1006 = vld [vmem:[%s10 + $0x24] sm:$0xf]
        %v1007 = vld [vmem:[%s10 + $0x28] sm:$0xf]
        %v1008 = vld [vmem:[%s10 + $0x2c] sm:$0xf]
        %v1009 = vld [vmem:[%s10 + $0x30] sm:$0xf]
        %v1010 = vld [vmem:[%s10 + $0x34] sm:$0xf]
        %v1011 = vld [vmem:[%s10 + $0x38] sm:$0xf]
        %v1012 = vld [vmem:[%s10 + $0x3c] sm:$0xf]
        %v1013 = vld [vmem:[%s11] sm:$0x1]
        %v1015 = vlaneseq
        %v1016 = vshrl.u32 %v1015, 7
        %v1017 = vsub.s32 0, %v1016
        %v1018 = vrot.slane %v1013, %v1017
        %v1036 = vunpack.c.l.b16 %v997
        %v1037 = vunpack.c.l.b16 %v998
        %v1038 = vunpack.c.l.b16 %v999
        %v1039 = vunpack.c.l.b16 %v1000
        %v1040 = vunpack.c.l.b16 %v1001
        %v1041 = vunpack.c.l.b16 %v1002
        %v1042 = vunpack.c.l.b16 %v1003
        %v1043 = vunpack.c.l.b16 %v1004
        %v1044 = vunpack.c.l.b16 %v1005
        %v1045 = vunpack.c.l.b16 %v1006
        %v1046 = vunpack.c.l.b16 %v1007
        %v1047 = vunpack.c.l.b16 %v1008
        %v1048 = vunpack.c.l.b16 %v1009
        %v1049 = vunpack.c.l.b16 %v1010
        %v1050 = vunpack.c.l.b16 %v1011
        %v1051 = vunpack.c.l.b16 %v1012
        %v1052 = vpack.c.b16 %v1037, %v1036
        %v1053 = vpack.c.b16 %v1039, %v1038
        %v1054 = vpack.c.b16 %v1041, %v1040
        %v1055 = vpack.c.b16 %v1043, %v1042
        %v1056 = vpack.c.b16 %v1045, %v1044
        %v1057 = vpack.c.b16 %v1047, %v1046
        %v1058 = vpack.c.b16 %v1049, %v1048
        %v1059 = vpack.c.b16 %v1051, %v1050
        %1068 = vmatprep.subr.bf16.mxu0 0
        %1069 = vmatpush1.bf16.msra.mxu0 %v1052
        %1070 = vmatprep.subr.bf16.mxu0 0
        %1071 = vmatpush1.bf16.msra.mxu0 %v1053
        %1072 = vmatprep.subr.bf16.mxu0 0
        %1073 = vmatpush1.bf16.msra.mxu0 %v1054
        %1074 = vmatprep.subr.bf16.mxu0 0
        %1075 = vmatpush1.bf16.msra.mxu0 %v1055
        %1076 = vmatprep.subr.bf16.mxu0 0
        %1077 = vmatpush1.bf16.msra.mxu0 %v1056
        %1078 = vmatprep.subr.bf16.mxu0 0
        %1079 = vmatpush1.bf16.msra.mxu0 %v1057
        %1080 = vmatprep.subr.bf16.mxu0 0
        %1081 = vmatpush1.bf16.msra.mxu0 %v1058
        %1082 = vmatprep.subr.bf16.mxu0 0
        %1083 = vmatpush1.bf16.msra.mxu0 %v1059
        %1084 = vmatprep.subr.bf16.mxu0 0
        %1085 = vmatpush1.bf16.msra.mxu0 0
        %1086 = vmatprep.subr.bf16.mxu0 0
        %1087 = vmatpush1.bf16.msra.mxu0 0
        %1088 = vmatprep.subr.bf16.mxu0 0
        %1089 = vmatpush1.bf16.msra.mxu0 0
        %1090 = vmatprep.subr.bf16.mxu0 0
        %1091 = vmatpush1.bf16.msra.mxu0 0
        %1092 = vmatprep.subr.bf16.mxu0 0
        %1093 = vmatpush1.bf16.msra.mxu0 0
        %1094 = vmatprep.subr.bf16.mxu0 0
        %1095 = vmatpush1.bf16.msra.mxu0 0
        %1096 = vmatprep.subr.bf16.mxu0 0
        %1097 = vmatpush1.bf16.msra.mxu0 0
        %1098 = vmatprep.subr.bf16.mxu0 0
        %1099 = vmatpush1.bf16.msra.mxu0 0
        %1100 = vmatprep.mubr.bf16.mxu0 0
        %1101 = vmatmul.mubr.bf16.gmra.mrb[0].mxu0 %v996
        %v1102 = vpop.f32.mrb[0].mxu0
        %v1103 = vadd.f32 %v1018, %v1102
        %v1104 = vpop.f32.mrb[0].mxu0
        %v1105 = vpop.f32.mrb[0].mxu0
        %v1106 = vadd.f32 %v1018, %v1105
        %v1107 = vpop.f32.mrb[0].mxu0
        %1108 = vdwg.mxu0
        %v1109 = vld [vmem:[%s747] sm:$0xff]
        %v1110 = vld [vmem:[%s747 + $0x8] sm:$0xff]
        %v1111 = vld [vmem:[%s12] sm:$0x1]
        %1113 = vset.pattern.permute.xlu0 0
        %1114 = vperm.xlu0 %1113, %v1109
        %v1115 = vpop.permute.xlu0 %1114
        %1118 = vset.pattern.permute.xlu0 0
        %1119 = vperm.xlu0 %1118, %v1110
        %v1120 = vpop.permute.xlu0 %1119
        %v1123 = vlaneseq
        %v1124 = vshrl.u32 %v1123, 7
        %v1125 = vsub.s32 0, %v1124
        %v1126 = vrot.slane %v1111, %v1125
        %v1128 = vmul.f32 %v1115, %v1126
        %v1129 = vmul.f32 %v1120, %v1126
        %v1130 = vld [vmem:[%s13] sm:$0x1]
        %v1132 = vlaneseq
        %v1133 = vshrl.u32 %v1132, 7
        %v1134 = vsub.s32 0, %v1133
        %v1135 = vrot.slane %v1130, %v1134
        %v1137 = vadd.f32 %v1128, %v1135
        %v1138 = vadd.f32 %v1129, %v1135
        %v1139 = vmul.f32 %v1137, 0.5
        %v1140 = vmul.f32 %v1138, 0.5
        %v1141 = vmul.f32 %v1137, 0.044715
        %v1142 = vmul.f32 %v1138, 0.044715
        %v1143 = vmul.f32 %v1141, %v1137
        %v1144 = vmul.f32 %v1142, %v1138
        %v1145 = vmul.f32 %v1143, %v1137
        %v1146 = vmul.f32 %v1144, %v1138
        %v1147 = vadd.f32 %v1137, %v1145
        %v1148 = vadd.f32 %v1138, %v1146
        %v1149 = vmul.f32 %v1147, 0.7978846
        %v1150 = vmul.f32 %v1148, 0.7978846
        %v1151 = vtanh.pop %v1149
        %v1152 = vtanh.pop %v1150
        %v1153 = vadd.f32 %v1151, 1.0
        %v1154 = vadd.f32 %v1152, 1.0
        %v1155 = vmul.f32 %v1139, %v1153
        %v1156 = vmul.f32 %v1140, %v1154
        %v1157 = vpack.c.bf16 %v1156, %v1155
        %v1158 = vld [vmem:[#allocation11] sm:$0xf]
        %v1159 = vld [vmem:[#allocation11 + $0x4] sm:$0xf]
        %v1160 = vld [vmem:[#allocation11 + $0x8] sm:$0xf]
        %v1161 = vld [vmem:[#allocation11 + $0xc] sm:$0xf]
        %v1162 = vld [vmem:[#allocation11 + $0x10] sm:$0xf]
        %v1163 = vld [vmem:[#allocation11 + $0x14] sm:$0xf]
        %v1164 = vld [vmem:[#allocation11 + $0x18] sm:$0xf]
        %v1165 = vld [vmem:[#allocation11 + $0x1c] sm:$0xf]
        %v1166 = vld [vmem:[#allocation11 + $0x20] sm:$0xf]
        %v1167 = vld [vmem:[#allocation11 + $0x24] sm:$0xf]
        %v1168 = vld [vmem:[#allocation11 + $0x28] sm:$0xf]
        %v1169 = vld [vmem:[#allocation11 + $0x2c] sm:$0xf]
        %v1170 = vld [vmem:[#allocation11 + $0x30] sm:$0xf]
        %v1171 = vld [vmem:[#allocation11 + $0x34] sm:$0xf]
        %v1172 = vld [vmem:[#allocation11 + $0x38] sm:$0xf]
        %v1173 = vld [vmem:[#allocation11 + $0x3c] sm:$0xf]
        %v1174 = vld [vmem:[%s15] sm:$0x1]
        %v1176 = vlaneseq
        %v1177 = vshrl.u32 %v1176, 7
        %v1178 = vsub.s32 0, %v1177
        %v1179 = vrot.slane %v1174, %v1178
        %v1197 = vunpack.c.l.b16 %v1158
        %v1198 = vunpack.c.l.b16 %v1159
        %v1199 = vunpack.c.l.b16 %v1160
        %v1200 = vunpack.c.l.b16 %v1161
        %v1201 = vunpack.c.l.b16 %v1162
        %v1202 = vunpack.c.l.b16 %v1163
        %v1203 = vunpack.c.l.b16 %v1164
        %v1204 = vunpack.c.l.b16 %v1165
        %v1205 = vunpack.c.l.b16 %v1166
        %v1206 = vunpack.c.l.b16 %v1167
        %v1207 = vunpack.c.l.b16 %v1168
        %v1208 = vunpack.c.l.b16 %v1169
        %v1209 = vunpack.c.l.b16 %v1170
        %v1210 = vunpack.c.l.b16 %v1171
        %v1211 = vunpack.c.l.b16 %v1172
        %v1212 = vunpack.c.l.b16 %v1173
        %v1213 = vpack.c.b16 %v1198, %v1197
        %v1214 = vpack.c.b16 %v1200, %v1199
        %v1215 = vpack.c.b16 %v1202, %v1201
        %v1216 = vpack.c.b16 %v1204, %v1203
        %v1217 = vpack.c.b16 %v1206, %v1205
        %v1218 = vpack.c.b16 %v1208, %v1207
        %v1219 = vpack.c.b16 %v1210, %v1209
        %v1220 = vpack.c.b16 %v1212, %v1211
        %1229 = vmatprep.subr.bf16.mxu0 0
        %1230 = vmatpush1.bf16.msra.mxu0 %v1213
        %1231 = vmatprep.subr.bf16.mxu0 0
        %1232 = vmatpush1.bf16.msra.mxu0 %v1214
        %1233 = vmatprep.subr.bf16.mxu0 0
        %1234 = vmatpush1.bf16.msra.mxu0 %v1215
        %1235 = vmatprep.subr.bf16.mxu0 0
        %1236 = vmatpush1.bf16.msra.mxu0 %v1216
        %1237 = vmatprep.subr.bf16.mxu0 0
        %1238 = vmatpush1.bf16.msra.mxu0 %v1217
        %1239 = vmatprep.subr.bf16.mxu0 0
        %1240 = vmatpush1.bf16.msra.mxu0 %v1218
        %1241 = vmatprep.subr.bf16.mxu0 0
        %1242 = vmatpush1.bf16.msra.mxu0 %v1219
        %1243 = vmatprep.subr.bf16.mxu0 0
        %1244 = vmatpush1.bf16.msra.mxu0 %v1220
        %1245 = vmatprep.subr.bf16.mxu0 0
        %1246 = vmatpush1.bf16.msra.mxu0 0
        %1247 = vmatprep.subr.bf16.mxu0 0
        %1248 = vmatpush1.bf16.msra.mxu0 0
        %1249 = vmatprep.subr.bf16.mxu0 0
        %1250 = vmatpush1.bf16.msra.mxu0 0
        %1251 = vmatprep.subr.bf16.mxu0 0
        %1252 = vmatpush1.bf16.msra.mxu0 0
        %1253 = vmatprep.subr.bf16.mxu0 0
        %1254 = vmatpush1.bf16.msra.mxu0 0
        %1255 = vmatprep.subr.bf16.mxu0 0
        %1256 = vmatpush1.bf16.msra.mxu0 0
        %1257 = vmatprep.subr.bf16.mxu0 0
        %1258 = vmatpush1.bf16.msra.mxu0 0
        %1259 = vmatprep.subr.bf16.mxu0 0
        %1260 = vmatpush1.bf16.msra.mxu0 0
        %1261 = vmatprep.mubr.bf16.mxu0 0
        %1262 = vmatmul.mubr.bf16.gmra.mrb[0].mxu0 %v1157
        %v1263 = vpop.f32.mrb[0].mxu0
        %v1264 = vadd.f32 %v1179, %v1263
        %v1265 = vpop.f32.mrb[0].mxu0
        %v1266 = vpop.f32.mrb[0].mxu0
        %v1267 = vadd.f32 %v1179, %v1266
        %v1268 = vpop.f32.mrb[0].mxu0
        %1269 = vdwg.mxu0
        %v1270 = vadd.f32 %v913, %v1103
        %v1271 = vadd.f32 %v914, %v1106
        %v1272 = vadd.f32 %v1270, %v1264
        %v1273 = vadd.f32 %v1271, %v1267
        %v1274 = vld [vmem:[%s751] sm:$0x1]
        %v1276 = vlaneseq
        %v1277 = vshrl.u32 %v1276, 7
        %v1278 = vsub.s32 0, %v1277
        %v1279 = vrot.slane %v1274, %v1278
        %v1281 = vadd.f32 %v1272, %v1279
        %v1282 = vadd.f32 %v1273, %v1279
        %1283 = vst [vmem:[%s732] sm:$0xff] %v1281
        %1284 = vst [vmem:[%s732 + $0x8] sm:$0xff] %v1282
        %s1285 = sand.u32 %s434, 1
        %s1286 = scalar_lea.sflag [#allocation4], %s1285
        %s1287 = sand.u32 %s434, 1
        %s1288 = smul.addr %s1287, 16
        %s1289 = scalar_lea.vmem [#allocation13], %s1288
        // Predicated region
        $region109: #{tpu_custom_call.1} parent=83 // pred_check
          %p1290 = pneg %p444
        $region110: #{tpu_custom_call.1} parent=83 // pred_check_branch
          %1292 = sbr.rel (%p1290) target = $region112
        $region111: #{tpu_custom_call.1} parent=83 // pred_region
          %s1293 = smul.u32 2, %s43
          %s1295 = ssub.s32 256, 256
          %1296 = vsyncadd %s1286, %s1295
          %s1297 = smul.addr %s42, 2
          %s1298 = sadd.s32 %s1293, %s1297
          %s1299 = smul.addr %s1298, 128
          %s1300 = scalar_lea.hbm %s16, %s1299
          %s1301 = sshll.u32 %s1289, 4
          %s1302 = int_to_ptr.vmem [resolvable:$true] %s1301
          %1307 = dma.vmem_to_hbm [thread:$0]  %s1302, 256, %s1300, %s1286, 128, 128, 8
        $region112: #{tpu_custom_call.1} parent=83 // pred_fallthru
          _
      $region84: #{tpu_custom_call.1} parent=5 // pred_fallthru
        _
      %p1308 = scmp.le.s32.totalorder 2, %s33
      // Predicated region
      $region113: #{tpu_custom_call.1} parent=5 // pred_check
        %p1309 = pneg %p1308
      $region114: #{tpu_custom_call.1} parent=5 // pred_check_branch
        %1311 = sbr.rel (%p1309) target = $region116
      $region115: #{tpu_custom_call.1} parent=5 // pred_region
        %s1312 = ssub.s32 %s33, 2
        // Predicated region
        $region117: #{tpu_custom_call.1} parent=115 // pred_check
          %p1313 = pneg %p450
        $region118: #{tpu_custom_call.1} parent=115 // pred_check_branch
          %1315 = sbr.rel (%p1313) target = $region120
        $region119: #{tpu_custom_call.1} parent=115 // pred_region
          %s1316 = sand.u32 %s435, 1
          %s1317 = scalar_lea.sflag [#allocation4], %s1316
          %s1318 = sand.u32 %s435, 1
          %s1319 = smul.addr %s1318, 16
          %s1320 = scalar_lea.vmem [#allocation13], %s1319
          %1321 = dma.done %s1317, 256
        $region120: #{tpu_custom_call.1} parent=115 // pred_fallthru
          _
      $region116: #{tpu_custom_call.1} parent=5 // pred_fallthru
        _
    $region6: #{tpu_custom_call.1} parent=1 // loop_footer
      %s37 = sadd.s32 1, %s33
    $region7: #{tpu_custom_call.1} parent=1 // loop_footer_branch
      %32 = sbr.rel target = $region3
    $region8: #{tpu_custom_call.1} parent=1 // loop_exit
      _
    %1322 = vsyncpa [#allocation3], 1
    %s1323 = scalar_lea.sflag [#allocation3], 1
    %1324 = vsyncpa %s1323, 1
    %1325 = vsyncpa [#allocation6], 1
    %s1326 = scalar_lea.sflag [#allocation6], 1
    %1327 = vsyncpa %s1326, 1
    %1328 = vsyncpa [#allocation9], 1
    %1329 = vsyncpa [#allocation12], 1
    %1330 = vsyncpa [#allocation4], 1
    %s1331 = scalar_lea.sflag [#allocation4], 1
    %1332 = vsyncpa %s1331, 1

</llo_original>
